<compile_context>
chip_gen: v7x
topology: tpu7x:2x2x1
jax: 0.10.0
libtpu: 0.0.40
codegen_flags: <defaults>
</compile_context>

<pallas_src>
import math

import jax
import jax.numpy as jnp
from jax import lax
from jax.experimental import pallas as pl
from jax.experimental.pallas import tpu as pltpu

# ----------------------------- configuration --------------------------------
H = 128            # hidden size (stand-in for 768)
NH = 4             # attention heads (stand-in for 12)
HD = H // NH       # head dim
FF = 256           # FFN intermediate size (stand-in for 3072)
L = 2              # number of encoder layers (stand-in for 12)
EMBED_SIZE = 64    # EncoderText.embed_size
EMBED_PAD = 128    # lane-dense padded output width (sliced back to 64 outside)
VOCAB = 64
MAX_POS = 32
EPS = 1e-12        # BERT LayerNorm eps

B = 2
S = 16
BS = B * S         # 32 tokens total
NHBS = NH * BS     # 128 = folded (head, key-token) axis -> full lane width


# ------------------------------- helpers --------------------------------------
def _layer_norm(x, gamma, beta):
    mean = jnp.mean(x, axis=-1, keepdims=True)
    var = jnp.mean((x - mean) ** 2, axis=-1, keepdims=True)
    return (x - mean) * lax.rsqrt(var + EPS) * gamma + beta


# ------------------------------- kernel --------------------------------------
def encoder_text_kernel(emb_ref, bias_ref, kmask_ref, vmask_ref, gsum_ref,
                        eg_ref, eb_ref,
                        wqkv_ref, bqkv_ref, wo_ref, bo_ref,
                        g1_ref, be1_ref, w1_ref, bf1_ref,
                        w2_ref, bf2_ref, g2_ref, be2_ref,
                        lw_ref, lb_ref, o_ref, h_ref):
    """One encoder layer per grid step; hidden state carried in VMEM scratch h_ref."""
    layer = pl.program_id(0)

    # Embedding LayerNorm only on the first grid step.
    @pl.when(layer == 0)
    def _():
        h_ref[...] = _layer_norm(emb_ref[...], eg_ref[...], eb_ref[...])

    h = h_ref[...]                                                  # (BS, H) f32

    # ---------------- attention ----------------
    x_bf = h.astype(jnp.bfloat16)
    # Fused QKV projection: one (BS,H)@(H,3H) bf16 MXU matmul, f32 accumulation.
    qkv = (jnp.dot(x_bf, wqkv_ref[0], preferred_element_type=jnp.float32)
           + bqkv_ref[0])                                           # (BS, 3H) f32
    q = qkv[:, :H]               # 1/sqrt(HD) already folded into Wq at init time
    k = qkv[:, H:2 * H]
    v = qkv[:, 2 * H:]

    # Block-expanded K: (H, NH*BS).  Column j holds key token (j % BS) of head (j // BS);
    # rows outside that head's HD channel slice are zeroed, so q @ k_exp contracts over
    # exactly that head's channels.  One 2-D transpose + one lane-concat + one mask mult.
    k_exp = (jnp.concatenate([k.T] * NH, axis=1) * kmask_ref[...]).astype(jnp.bfloat16)
    sc = (jnp.dot(q.astype(jnp.bfloat16), k_exp,
                  preferred_element_type=jnp.float32)
          + bias_ref[...])                                          # (BS, NH*BS) lane-dense

    # Per-(head, caption) softmax over 32-lane groups of the dense 128-lane axis.
    # The row-wide max is a valid shift for every group (softmax shift invariance).
    sc = sc - jnp.max(sc, axis=-1, keepdims=True)
    p = jnp.exp(sc)                                                 # (32,128) dense vregs
    # Per-head denominators broadcast back to every lane of the group via one small
    # MXU matmul with a constant 0/1 group matrix (no partial-lane reductions).
    denom = jnp.dot(p, gsum_ref[...], preferred_element_type=jnp.float32)
    p = p * pl.reciprocal(denom, approx=True)

    # Block-expanded V: (NH*BS, H).  Row i holds value of key token (i % BS), masked to
    # head (i // BS)'s channel slice, so p @ v_exp lands with heads already concatenated
    # on the lane axis -- no per-head re-assembly needed before Wo.
    v_exp = (jnp.concatenate([v] * NH, axis=0) * vmask_ref[...]).astype(jnp.bfloat16)
    ctx = jnp.dot(p.astype(jnp.bfloat16), v_exp,
                  preferred_element_type=jnp.float32)               # (BS, H) f32

    attn = (jnp.dot(ctx.astype(jnp.bfloat16), wo_ref[0],
                    preferred_element_type=jnp.float32) + bo_ref[0])
    h1 = _layer_norm(h + attn, g1_ref[0], be1_ref[0])

    # ---------------- FFN ----------------
    ff = (jnp.dot(h1.astype(jnp.bfloat16), w1_ref[0],
                  preferred_element_type=jnp.float32) + bf1_ref[0])
    # TODO(synk): HF BERT uses exact (erf) GELU; tanh approximation used here (EUP-friendly).
    ff = jax.nn.gelu(ff, approximate=True)
    ff = (jnp.dot(ff.astype(jnp.bfloat16), w2_ref[0],
                  preferred_element_type=jnp.float32) + bf2_ref[0])
    h_new = _layer_norm(h1 + ff, g2_ref[0], be2_ref[0])
    h_ref[...] = h_new

    # Final linear (nn.Linear(768, embed_size) analogue) on the last layer only.
    # Output is a lane-dense 128-wide slab (cols 64..127 are zero padding).
    @pl.when(layer == pl.num_programs(0) - 1)
    def _():
        o_ref[...] = (jnp.dot(h_new.astype(jnp.bfloat16), lw_ref[...],
                              preferred_element_type=jnp.float32) + lb_ref[...])


# ------------------------------ pallas_call wrapper ---------------------------
def run_encoder_text(emb, attn_bias, kexp_mask, vexp_mask, gsum_mat, params):
    args = (emb, attn_bias, kexp_mask, vexp_mask, gsum_mat,
            params["emb_gamma"], params["emb_beta"],
            params["wqkv"], params["bqkv"], params["wo"], params["bo"],
            params["g1"], params["be1"], params["w1"], params["bf1"],
            params["w2"], params["bf2"], params["g2"], params["be2"],
            params["lin_w"], params["lin_b"])

    def const_spec(a):                      # same block every layer step
        nd = a.ndim
        return pl.BlockSpec(a.shape, lambda l, _nd=nd: (0,) * _nd)

    def layer_spec(a):                      # (1, ...) block indexed by the layer step
        blk = (1,) + a.shape[1:]
        zeros = (0,) * (a.ndim - 1)
        return pl.BlockSpec(blk, lambda l, _z=zeros: (l,) + _z)

    in_specs = ([const_spec(a) for a in args[:7]]        # emb, bias, masks, emb-LN params
                + [layer_spec(a) for a in args[7:19]]    # per-layer streamed weights
                + [const_spec(a) for a in args[19:]])    # final linear

    # Layer index is an "arbitrary" grid axis: Pallas double-buffers each per-layer
    # weight block (prefetch layer l+1 while computing layer l) -- at real BERT-base
    # scale this is what keeps the working set inside 64 MiB (v7x) / 128 MiB (v5e/v6e);
    # use pipeline_mode=pl.Buffered(3) on v6e there to hide its slower HBM.
    # TODO(synk): at real batch/seq, add a leading "parallel" caption-tile grid axis
    # (128 rows on v5e, 256 on v6e/v7x) so v7x's second TensorCore takes half the rows,
    # and switch attention to a flash-style KV-tiled loop instead of full S x S scores.
    return pl.pallas_call(
        encoder_text_kernel,
        out_shape=jax.ShapeDtypeStruct((BS, EMBED_PAD), jnp.float32),
        grid=(L,),
        in_specs=in_specs,
        out_specs=pl.BlockSpec((BS, EMBED_PAD), lambda l: (0, 0)),
        scratch_shapes=[pltpu.VMEM((BS, H), jnp.float32)],   # hidden-state carry
        compiler_params=pltpu.CompilerParams(
            dimension_semantics=("arbitrary",),
            vmem_limit_bytes=32 * 1024 * 1024),
    )(*args)


# ----------------------------- parameter init --------------------------------
def init_params(key):
    keys = iter(jax.random.split(key, 64))
    nrm = lambda shape: (0.02 * jax.random.normal(next(keys), shape)).astype(jnp.float32)
    scale = 1.0 / math.sqrt(HD)

    wqkv, w_o, w_1, w_2 = [], [], [], []
    for _ in range(L):
        # 1/sqrt(head_dim) folded into Wq (and bq, which is zero) at build time ->
        # no per-step score scaling inside the kernel.
        wq, wk, wv = nrm((H, H)) * scale, nrm((H, H)), nrm((H, H))
        wqkv.append(jnp.concatenate([wq, wk, wv], axis=1))
        w_o.append(nrm((H, H)))
        w_1.append(nrm((H, FF)))
        w_2.append(nrm((FF, H)))

    return {
        "word_emb": nrm((VOCAB, H)),
        "pos_emb": nrm((MAX_POS, H)),
        "type_emb": nrm((2, H)),
        "emb_gamma": jnp.ones((1, H), jnp.float32),
        "emb_beta": jnp.zeros((1, H), jnp.float32),
        # Matmul weights stored bf16 (MXU-friendly); biases / LN params stay f32.
        "wqkv": jnp.stack(wqkv, 0).astype(jnp.bfloat16),        # (L, H, 3H), Wq pre-scaled
        "bqkv": jnp.zeros((L, 1, 3 * H), jnp.float32),
        "wo": jnp.stack(w_o, 0).astype(jnp.bfloat16),
        "bo": jnp.zeros((L, 1, H), jnp.float32),
        "g1": jnp.ones((L, 1, H), jnp.float32),
        "be1": jnp.zeros((L, 1, H), jnp.float32),
        "w1": jnp.stack(w_1, 0).astype(jnp.bfloat16),
        "bf1": jnp.zeros((L, 1, FF), jnp.float32),
        "w2": jnp.stack(w_2, 0).astype(jnp.bfloat16),
        "bf2": jnp.zeros((L, 1, H), jnp.float32),
        "g2": jnp.ones((L, 1, H), jnp.float32),
        "be2": jnp.zeros((L, 1, H), jnp.float32),
        # nn.Linear(768, embed_size) analogue, padded to 128 lanes for dense stores.
        "lin_w": jnp.pad(nrm((H, EMBED_SIZE)),
                         ((0, 0), (0, EMBED_PAD - EMBED_SIZE))).astype(jnp.bfloat16),
        "lin_b": jnp.zeros((1, EMBED_PAD), jnp.float32),
    }


# ------------------------------- forward --------------------------------------
def encoder_text_forward(x_tokens, params):
    b, s = x_tokens.shape
    # bert_attention_mask = (x != 0)
    mask = (x_tokens != 0).astype(jnp.float32)                      # (B, S), 1 = real token

    # Attention bias for the folded (query-token, head*key-token) score layout:
    # column j of the (BS, NH*BS) score matrix = (head j // BS, key token j % BS).
    col = jnp.arange(NHBS)
    col_head = col // BS
    col_tok = col % BS
    row_b = jnp.arange(BS) // S                                     # caption id of query
    col_b = col_tok // S                                            # caption id of key
    key_pad = (1.0 - mask.reshape(BS))[col_tok] * -10000.0          # BERT additive key mask
    attn_bias = jnp.where(row_b[:, None] == col_b[None, :],
                          key_pad[None, :], -1.0e9).astype(jnp.float32)   # (BS, NH*BS)

    # Constant block matrices for the head-expanded K / V trick (token independent).
    chan_head = jnp.arange(H) // HD                                 # head owning channel c
    kexp_mask = (chan_head[:, None] == col_head[None, :]).astype(jnp.float32)  # (H, NHBS)
    vexp_mask = (col_head[:, None] == chan_head[None, :]).astype(jnp.float32)  # (NHBS, H)
    gsum_mat = (col_head[:, None] == col_head[None, :]).astype(jnp.float32)    # (NHBS, NHBS)

    # BERT embeddings: word + position + token-type(0).  Gathers are plain-JAX glue;
    # the embedding LayerNorm runs inside the fused kernel.
    # TODO(synk): at real scale, scalar-prefetch the token ids and row-gather with a
    # pl.Element BlockSpec to avoid the HBM round-trip of the (B*S, H) embedding slab.
    emb = (params["word_emb"][x_tokens]
           + params["pos_emb"][:s][None, :, :]
           + params["type_emb"][0][None, None, :]).reshape(b * s, H)

    out = run_encoder_text(emb, attn_bias, kexp_mask, vexp_mask, gsum_mat, params)
    # cap_emb = self.linear(bert_emb): slice off the lane padding.
    return out[:, :EMBED_SIZE].reshape(b, s, EMBED_SIZE)


# --------------------------- pure-JAX reference -------------------------------
def reference_forward(emb, mask, params):
    """Standard per-head attention in f32 (independent formulation) for a sanity check."""
    h = _layer_norm(emb, params["emb_gamma"], params["emb_beta"])
    key_bias = ((1.0 - mask) * -10000.0).reshape(B, 1, 1, S)

    def split_heads(t):
        return t.reshape(B, S, NH, HD).transpose(0, 2, 1, 3)        # (B, NH, S, HD)

    for l in range(L):
        qkv = h @ params["wqkv"][l].astype(jnp.float32) + params["bqkv"][l]
        qh = split_heads(qkv[:, :H])          # scale already folded into Wq
        kh = split_heads(qkv[:, H:2 * H])
        vh = split_heads(qkv[:, 2 * H:])
        sc = jnp.einsum("bhqd,bhkd->bhqk", qh, kh) + key_bias
        p = jax.nn.softmax(sc, axis=-1)
        ctx = (jnp.einsum("bhqk,bhkd->bhqd", p, vh)
               .transpose(0, 2, 1, 3).reshape(BS, H))
        attn = ctx @ params["wo"][l].astype(jnp.float32) + params["bo"][l]
        h1 = _layer_norm(h + attn, params["g1"][l], params["be1"][l])
        ff = h1 @ params["w1"][l].astype(jnp.float32) + params["bf1"][l]
        ff = jax.nn.gelu(ff, approximate=True)
        ff = ff @ params["w2"][l].astype(jnp.float32) + params["bf2"][l]
        h = _layer_norm(h1 + ff, params["g2"][l], params["be2"][l])

    out = h @ params["lin_w"].astype(jnp.float32) + params["lin_b"]
    return out[:, :EMBED_SIZE].reshape(B, S, EMBED_SIZE)


# --------------------------------- main ----------------------------------------
if __name__ == "__main__":
    key = jax.random.PRNGKey(0)
    k_tok, k_par = jax.random.split(key)

    # Token ids in [1, VOCAB); zero-pad the tail of the second caption so the
    # attention mask (x != 0) is actually exercised.
    x = jax.random.randint(k_tok, (B, S), 1, VOCAB, dtype=jnp.int32)
    x = x.at[1, 10:].set(0)

    params = init_params(k_par)

    cap_emb = jax.jit(encoder_text_forward)(x, params)
    cap_emb = jax.block_until_ready(cap_emb)

    # Loose numerical check against the standard-formulation reference (bf16 matmuls +
    # approximate reciprocal inside the kernel vs f32 reference).
    mask = (x != 0).astype(jnp.float32)
    emb = (params["word_emb"][x] + params["pos_emb"][:S][None, :, :]
           + params["type_emb"][0][None, None, :]).reshape(BS, H)
    ref = reference_forward(emb, mask, params)
    max_err = float(jnp.max(jnp.abs(cap_emb - ref)))

    assert cap_emb.shape == (B, S, EMBED_SIZE)
    assert jnp.all(jnp.isfinite(cap_emb))
    assert max_err < 7.5e-2, f"kernel deviates from reference: max_err={max_err}"
    print("KERNEL_OK")
</pallas_src>

<mosaic_0001>
module attributes {stable_mosaic.version = 11 : i64} {
  func.func @encoder_text_kernel(%arg0: i32, %arg1: memref<32x128xf32, #tpu.memory_space<vmem>>, %arg2: memref<32x128xf32, #tpu.memory_space<vmem>>, %arg3: memref<128x128xf32, #tpu.memory_space<vmem>>, %arg4: memref<128x128xf32, #tpu.memory_space<vmem>>, %arg5: memref<128x128xf32, #tpu.memory_space<vmem>>, %arg6: memref<1x128xf32, #tpu.memory_space<vmem>>, %arg7: memref<1x128xf32, #tpu.memory_space<vmem>>, %arg8: memref<1x128x384xbf16, #tpu.memory_space<vmem>>, %arg9: memref<1x1x384xf32, #tpu.memory_space<vmem>>, %arg10: memref<1x128x128xbf16, #tpu.memory_space<vmem>>, %arg11: memref<1x1x128xf32, #tpu.memory_space<vmem>>, %arg12: memref<1x1x128xf32, #tpu.memory_space<vmem>>, %arg13: memref<1x1x128xf32, #tpu.memory_space<vmem>>, %arg14: memref<1x128x256xbf16, #tpu.memory_space<vmem>>, %arg15: memref<1x1x256xf32, #tpu.memory_space<vmem>>, %arg16: memref<1x256x128xbf16, #tpu.memory_space<vmem>>, %arg17: memref<1x1x128xf32, #tpu.memory_space<vmem>>, %arg18: memref<1x1x128xf32, #tpu.memory_space<vmem>>, %arg19: memref<1x1x128xf32, #tpu.memory_space<vmem>>, %arg20: memref<128x128xbf16, #tpu.memory_space<vmem>>, %arg21: memref<1x128xf32, #tpu.memory_space<vmem>>, %arg22: memref<32x128xf32, #tpu.memory_space<vmem>>, %arg23: memref<32x128xf32, #tpu.memory_space<vmem>>) attributes {dimension_semantics = [#tpu.dimension_semantics<arbitrary>], iteration_bounds = array<i64: 2>, scalar_prefetch = 0 : i64, scratch_operands = 1 : i64, tpu.core_type = #tpu.core_type<tc>, window_params = [{pipeline_mode = #tpu.pipeline_mode<synchronous>, transform_indices = @transform_0, window_bounds = array<i64: 32, 128>}, {pipeline_mode = #tpu.pipeline_mode<synchronous>, transform_indices = @transform_1, window_bounds = array<i64: 32, 128>}, {pipeline_mode = #tpu.pipeline_mode<synchronous>, transform_indices = @transform_2, window_bounds = array<i64: 128, 128>}, {pipeline_mode = #tpu.pipeline_mode<synchronous>, transform_indices = @transform_3, window_bounds = array<i64: 128, 128>}, {pipeline_mode = #tpu.pipeline_mode<synchronous>, transform_indices = @transform_4, window_bounds = array<i64: 128, 128>}, {pipeline_mode = #tpu.pipeline_mode<synchronous>, transform_indices = @transform_5, window_bounds = array<i64: 1, 128>}, {pipeline_mode = #tpu.pipeline_mode<synchronous>, transform_indices = @transform_6, window_bounds = array<i64: 1, 128>}, {transform_indices = @transform_7, window_bounds = array<i64: 1, 128, 384>}, {transform_indices = @transform_8, window_bounds = array<i64: 1, 1, 384>}, {transform_indices = @transform_9, window_bounds = array<i64: 1, 128, 128>}, {transform_indices = @transform_10, window_bounds = array<i64: 1, 1, 128>}, {transform_indices = @transform_11, window_bounds = array<i64: 1, 1, 128>}, {transform_indices = @transform_12, window_bounds = array<i64: 1, 1, 128>}, {transform_indices = @transform_13, window_bounds = array<i64: 1, 128, 256>}, {transform_indices = @transform_14, window_bounds = array<i64: 1, 1, 256>}, {transform_indices = @transform_15, window_bounds = array<i64: 1, 256, 128>}, {transform_indices = @transform_16, window_bounds = array<i64: 1, 1, 128>}, {transform_indices = @transform_17, window_bounds = array<i64: 1, 1, 128>}, {transform_indices = @transform_18, window_bounds = array<i64: 1, 1, 128>}, {pipeline_mode = #tpu.pipeline_mode<synchronous>, transform_indices = @transform_19, window_bounds = array<i64: 128, 128>}, {pipeline_mode = #tpu.pipeline_mode<synchronous>, transform_indices = @transform_20, window_bounds = array<i64: 1, 128>}, {pipeline_mode = #tpu.pipeline_mode<synchronous>, transform_indices = @transform_21, window_bounds = array<i64: 32, 128>}]} {
    %c0_i32 = arith.constant 0 : i32
    %0 = arith.cmpi eq, %arg0, %c0_i32 : i32
    %1 = arith.extui %0 : i1 to i32
    %c0_i32_0 = arith.constant 0 : i32
    %2 = arith.cmpi ne, %1, %c0_i32_0 : i32
    scf.if %2 {
      %c0_70 = arith.constant 0 : index
      %c0_71 = arith.constant 0 : index
      %134 = vector.load %arg1[%c0_70, %c0_71] : memref<32x128xf32, #tpu.memory_space<vmem>>, vector<32x128xf32>
      %c0_72 = arith.constant 0 : index
      %c0_73 = arith.constant 0 : index
      %135 = vector.load %arg6[%c0_72, %c0_73] : memref<1x128xf32, #tpu.memory_space<vmem>>, vector<1x128xf32>
      %c0_74 = arith.constant 0 : index
      %c0_75 = arith.constant 0 : index
      %136 = vector.load %arg7[%c0_74, %c0_75] : memref<1x128xf32, #tpu.memory_space<vmem>>, vector<1x128xf32>
      %cst_76 = arith.constant dense<0.000000e+00> : vector<32xf32>
      %137 = vector.multi_reduction <add>, %134, %cst_76 [1] : vector<32x128xf32> to vector<32xf32>
      %138 = vector.shape_cast %137 : vector<32xf32> to vector<32x1xf32>
      %cst_77 = arith.constant 1.280000e+02 : f32
      %139 = vector.broadcast %cst_77 : f32 to vector<32x1xf32>
      %140 = arith.divf %138, %139 : vector<32x1xf32>
      %141 = vector.broadcast %140 : vector<32x1xf32> to vector<32x128xf32>
      %142 = arith.subf %134, %141 : vector<32x128xf32>
      %143 = arith.mulf %142, %142 : vector<32x128xf32>
      %cst_78 = arith.constant dense<0.000000e+00> : vector<32xf32>
      %144 = vector.multi_reduction <add>, %143, %cst_78 [1] : vector<32x128xf32> to vector<32xf32>
      %145 = vector.shape_cast %144 : vector<32xf32> to vector<32x1xf32>
      %cst_79 = arith.constant 1.280000e+02 : f32
      %146 = vector.broadcast %cst_79 : f32 to vector<32x1xf32>
      %147 = arith.divf %145, %146 : vector<32x1xf32>
      %148 = vector.broadcast %140 : vector<32x1xf32> to vector<32x128xf32>
      %149 = arith.subf %134, %148 : vector<32x128xf32>
      %cst_80 = arith.constant 9.99999996E-13 : f32
      %150 = vector.broadcast %cst_80 : f32 to vector<32x1xf32>
      %151 = arith.addf %147, %150 : vector<32x1xf32>
      %152 = math.rsqrt %151 : vector<32x1xf32>
      %153 = vector.broadcast %152 : vector<32x1xf32> to vector<32x128xf32>
      %154 = arith.mulf %149, %153 : vector<32x128xf32>
      %155 = vector.broadcast %135 : vector<1x128xf32> to vector<32x128xf32>
      %156 = arith.mulf %154, %155 : vector<32x128xf32>
      %157 = vector.broadcast %136 : vector<1x128xf32> to vector<32x128xf32>
      %158 = arith.addf %156, %157 : vector<32x128xf32>
      %c0_81 = arith.constant 0 : index
      %c0_82 = arith.constant 0 : index
      %159 = vector.load %arg23[%c0_81, %c0_82] : memref<32x128xf32, #tpu.memory_space<vmem>>, vector<32x128xf32>
      tpu.vector_store %arg23[%c0_81, %c0_82], %158 {strides = array<i32>} : memref<32x128xf32, #tpu.memory_space<vmem>>, vector<32x128xf32>,
    } else {
    }
    %c0 = arith.constant 0 : index
    %c0_1 = arith.constant 0 : index
    %3 = vector.load %arg23[%c0, %c0_1] : memref<32x128xf32, #tpu.memory_space<vmem>>, vector<32x128xf32>
    %4 = arith.truncf %3 : vector<32x128xf32> to vector<32x128xbf16>
    %c0_2 = arith.constant 0 : index
    %c0_3 = arith.constant 0 : index
    %c0_4 = arith.constant 0 : index
    %5 = vector.load %arg8[%c0_2, %c0_3, %c0_4] : memref<1x128x384xbf16, #tpu.memory_space<vmem>>, vector<1x128x384xbf16>
    %6 = vector.shape_cast %5 : vector<1x128x384xbf16> to vector<128x384xbf16>
    %cst = arith.constant dense<0.000000e+00> : vector<32x384xf32>
    %7 = tpu.matmul %4, %6, %cst {dimension_numbers = #tpu.dot_dimension_numbers<[1], [0], [0], [1], [0, 0, 1, 1], [], []>} : vector<32x128xbf16>, vector<128x384xbf16>, vector<32x384xf32> -> vector<32x384xf32>
    %c0_5 = arith.constant 0 : index
    %c0_6 = arith.constant 0 : index
    %c0_7 = arith.constant 0 : index
    %8 = vector.load %arg9[%c0_5, %c0_6, %c0_7] : memref<1x1x384xf32, #tpu.memory_space<vmem>>, vector<1x1x384xf32>
    %9 = vector.shape_cast %8 : vector<1x1x384xf32> to vector<1x384xf32>
    %10 = vector.broadcast %9 : vector<1x384xf32> to vector<32x384xf32>
    %11 = arith.addf %7, %10 : vector<32x384xf32>
    %12 = vector.extract_strided_slice %11 {offsets = [0, 0], sizes = [32, 128], strides = [1, 1]} : vector<32x384xf32> to vector<32x128xf32>
    %13 = vector.extract_strided_slice %11 {offsets = [0, 128], sizes = [32, 128], strides = [1, 1]} : vector<32x384xf32> to vector<32x128xf32>
    %14 = vector.extract_strided_slice %11 {offsets = [0, 256], sizes = [32, 128], strides = [1, 1]} : vector<32x384xf32> to vector<32x128xf32>
    %15 = tpu.transpose %13, [1, 0] : vector<32x128xf32> -> vector<128x32xf32>
    %16 = tpu.concatenate %15, %15, %15, %15 in 1 : vector<128x32xf32>, vector<128x32xf32>, vector<128x32xf32>, vector<128x32xf32> -> vector<128x128xf32>
    %c0_8 = arith.constant 0 : index
    %c0_9 = arith.constant 0 : index
    %17 = vector.load %arg3[%c0_8, %c0_9] : memref<128x128xf32, #tpu.memory_space<vmem>>, vector<128x128xf32>
    %18 = arith.mulf %16, %17 : vector<128x128xf32>
    %19 = arith.truncf %18 : vector<128x128xf32> to vector<128x128xbf16>
    %20 = arith.truncf %12 : vector<32x128xf32> to vector<32x128xbf16>
    %cst_10 = arith.constant dense<0.000000e+00> : vector<32x128xf32>
    %21 = tpu.matmul %20, %19, %cst_10 {dimension_numbers = #tpu.dot_dimension_numbers<[1], [0], [0], [1], [0, 0, 1, 1], [], []>} : vector<32x128xbf16>, vector<128x128xbf16>, vector<32x128xf32> -> vector<32x128xf32>
    %c0_11 = arith.constant 0 : index
    %c0_12 = arith.constant 0 : index
    %22 = vector.load %arg2[%c0_11, %c0_12] : memref<32x128xf32, #tpu.memory_space<vmem>>, vector<32x128xf32>
    %23 = arith.addf %21, %22 : vector<32x128xf32>
    %cst_13 = arith.constant dense<0xFF800000> : vector<32xf32>
    %24 = vector.multi_reduction <maximumf>, %23, %cst_13 [1] : vector<32x128xf32> to vector<32xf32>
    %25 = vector.shape_cast %24 : vector<32xf32> to vector<32x1xf32>
    %26 = vector.broadcast %25 : vector<32x1xf32> to vector<32x128xf32>
    %27 = arith.subf %23, %26 : vector<32x128xf32>
    %28 = math.exp %27 : vector<32x128xf32>
    %c0_14 = arith.constant 0 : index
    %c0_15 = arith.constant 0 : index
    %29 = vector.load %arg5[%c0_14, %c0_15] : memref<128x128xf32, #tpu.memory_space<vmem>>, vector<128x128xf32>
    %cst_16 = arith.constant dense<0.000000e+00> : vector<32x128xf32>
    %30 = tpu.matmul %28, %29, %cst_16 {dimension_numbers = #tpu.dot_dimension_numbers<[1], [0], [0], [1], [0, 0, 1, 1], [], []>} : vector<32x128xf32>, vector<128x128xf32>, vector<32x128xf32> -> vector<32x128xf32>
    %31 = tpu.reciprocal %30 {approx = true} : vector<32x128xf32> -> vector<32x128xf32>
    %32 = arith.mulf %28, %31 : vector<32x128xf32>
    %33 = tpu.concatenate %14, %14, %14, %14 in 0 : vector<32x128xf32>, vector<32x128xf32>, vector<32x128xf32>, vector<32x128xf32> -> vector<128x128xf32>
    %c0_17 = arith.constant 0 : index
    %c0_18 = arith.constant 0 : index
    %34 = vector.load %arg4[%c0_17, %c0_18] : memref<128x128xf32, #tpu.memory_space<vmem>>, vector<128x128xf32>
    %35 = arith.mulf %33, %34 : vector<128x128xf32>
    %36 = arith.truncf %35 : vector<128x128xf32> to vector<128x128xbf16>
    %37 = arith.truncf %32 : vector<32x128xf32> to vector<32x128xbf16>
    %cst_19 = arith.constant dense<0.000000e+00> : vector<32x128xf32>
    %38 = tpu.matmul %37, %36, %cst_19 {dimension_numbers = #tpu.dot_dimension_numbers<[1], [0], [0], [1], [0, 0, 1, 1], [], []>} : vector<32x128xbf16>, vector<128x128xbf16>, vector<32x128xf32> -> vector<32x128xf32>
    %39 = arith.truncf %38 : vector<32x128xf32> to vector<32x128xbf16>
    %c0_20 = arith.constant 0 : index
    %c0_21 = arith.constant 0 : index
    %c0_22 = arith.constant 0 : index
    %40 = vector.load %arg10[%c0_20, %c0_21, %c0_22] : memref<1x128x128xbf16, #tpu.memory_space<vmem>>, vector<1x128x128xbf16>
    %41 = vector.shape_cast %40 : vector<1x128x128xbf16> to vector<128x128xbf16>
    %cst_23 = arith.constant dense<0.000000e+00> : vector<32x128xf32>
    %42 = tpu.matmul %39, %41, %cst_23 {dimension_numbers = #tpu.dot_dimension_numbers<[1], [0], [0], [1], [0, 0, 1, 1], [], []>} : vector<32x128xbf16>, vector<128x128xbf16>, vector<32x128xf32> -> vector<32x128xf32>
    %c0_24 = arith.constant 0 : index
    %c0_25 = arith.constant 0 : index
    %c0_26 = arith.constant 0 : index
    %43 = vector.load %arg11[%c0_24, %c0_25, %c0_26] : memref<1x1x128xf32, #tpu.memory_space<vmem>>, vector<1x1x128xf32>
    %44 = vector.shape_cast %43 : vector<1x1x128xf32> to vector<1x128xf32>
    %45 = vector.broadcast %44 : vector<1x128xf32> to vector<32x128xf32>
    %46 = arith.addf %42, %45 : vector<32x128xf32>
    %47 = arith.addf %3, %46 : vector<32x128xf32>
    %c0_27 = arith.constant 0 : index
    %c0_28 = arith.constant 0 : index
    %c0_29 = arith.constant 0 : index
    %48 = vector.load %arg12[%c0_27, %c0_28, %c0_29] : memref<1x1x128xf32, #tpu.memory_space<vmem>>, vector<1x1x128xf32>
    %49 = vector.shape_cast %48 : vector<1x1x128xf32> to vector<1x128xf32>
    %c0_30 = arith.constant 0 : index
    %c0_31 = arith.constant 0 : index
    %c0_32 = arith.constant 0 : index
    %50 = vector.load %arg13[%c0_30, %c0_31, %c0_32] : memref<1x1x128xf32, #tpu.memory_space<vmem>>, vector<1x1x128xf32>
    %51 = vector.shape_cast %50 : vector<1x1x128xf32> to vector<1x128xf32>
    %cst_33 = arith.constant dense<0.000000e+00> : vector<32xf32>
    %52 = vector.multi_reduction <add>, %47, %cst_33 [1] : vector<32x128xf32> to vector<32xf32>
    %53 = vector.shape_cast %52 : vector<32xf32> to vector<32x1xf32>
    %cst_34 = arith.constant 1.280000e+02 : f32
    %54 = vector.broadcast %cst_34 : f32 to vector<32x1xf32>
    %55 = arith.divf %53, %54 : vector<32x1xf32>
    %56 = vector.broadcast %55 : vector<32x1xf32> to vector<32x128xf32>
    %57 = arith.subf %47, %56 : vector<32x128xf32>
    %58 = arith.mulf %57, %57 : vector<32x128xf32>
    %cst_35 = arith.constant dense<0.000000e+00> : vector<32xf32>
    %59 = vector.multi_reduction <add>, %58, %cst_35 [1] : vector<32x128xf32> to vector<32xf32>
    %60 = vector.shape_cast %59 : vector<32xf32> to vector<32x1xf32>
    %cst_36 = arith.constant 1.280000e+02 : f32
    %61 = vector.broadcast %cst_36 : f32 to vector<32x1xf32>
    %62 = arith.divf %60, %61 : vector<32x1xf32>
    %63 = vector.broadcast %55 : vector<32x1xf32> to vector<32x128xf32>
    %64 = arith.subf %47, %63 : vector<32x128xf32>
    %cst_37 = arith.constant 9.99999996E-13 : f32
    %65 = vector.broadcast %cst_37 : f32 to vector<32x1xf32>
    %66 = arith.addf %62, %65 : vector<32x1xf32>
    %67 = math.rsqrt %66 : vector<32x1xf32>
    %68 = vector.broadcast %67 : vector<32x1xf32> to vector<32x128xf32>
    %69 = arith.mulf %64, %68 : vector<32x128xf32>
    %70 = vector.broadcast %49 : vector<1x128xf32> to vector<32x128xf32>
    %71 = arith.mulf %69, %70 : vector<32x128xf32>
    %72 = vector.broadcast %51 : vector<1x128xf32> to vector<32x128xf32>
    %73 = arith.addf %71, %72 : vector<32x128xf32>
    %74 = arith.truncf %73 : vector<32x128xf32> to vector<32x128xbf16>
    %c0_38 = arith.constant 0 : index
    %c0_39 = arith.constant 0 : index
    %c0_40 = arith.constant 0 : index
    %75 = vector.load %arg14[%c0_38, %c0_39, %c0_40] : memref<1x128x256xbf16, #tpu.memory_space<vmem>>, vector<1x128x256xbf16>
    %76 = vector.shape_cast %75 : vector<1x128x256xbf16> to vector<128x256xbf16>
    %cst_41 = arith.constant dense<0.000000e+00> : vector<32x256xf32>
    %77 = tpu.matmul %74, %76, %cst_41 {dimension_numbers = #tpu.dot_dimension_numbers<[1], [0], [0], [1], [0, 0, 1, 1], [], []>} : vector<32x128xbf16>, vector<128x256xbf16>, vector<32x256xf32> -> vector<32x256xf32>
    %c0_42 = arith.constant 0 : index
    %c0_43 = arith.constant 0 : index
    %c0_44 = arith.constant 0 : index
    %78 = vector.load %arg15[%c0_42, %c0_43, %c0_44] : memref<1x1x256xf32, #tpu.memory_space<vmem>>, vector<1x1x256xf32>
    %79 = vector.shape_cast %78 : vector<1x1x256xf32> to vector<1x256xf32>
    %80 = vector.broadcast %79 : vector<1x256xf32> to vector<32x256xf32>
    %81 = arith.addf %77, %80 : vector<32x256xf32>
    %82 = arith.mulf %81, %81 : vector<32x256xf32>
    %83 = arith.mulf %81, %82 : vector<32x256xf32>
    %cst_45 = arith.constant 4.471500e-02 : f32
    %84 = vector.broadcast %cst_45 : f32 to vector<32x256xf32>
    %85 = arith.mulf %84, %83 : vector<32x256xf32>
    %86 = arith.addf %81, %85 : vector<32x256xf32>
    %cst_46 = arith.constant 0.797884583 : f32
    %87 = vector.broadcast %cst_46 : f32 to vector<32x256xf32>
    %88 = arith.mulf %87, %86 : vector<32x256xf32>
    %89 = math.tanh %88 : vector<32x256xf32>
    %cst_47 = arith.constant 1.000000e+00 : f32
    %90 = vector.broadcast %cst_47 : f32 to vector<32x256xf32>
    %91 = arith.addf %90, %89 : vector<32x256xf32>
    %cst_48 = arith.constant 5.000000e-01 : f32
    %92 = vector.broadcast %cst_48 : f32 to vector<32x256xf32>
    %93 = arith.mulf %92, %91 : vector<32x256xf32>
    %94 = arith.mulf %81, %93 : vector<32x256xf32>
    %95 = arith.truncf %94 : vector<32x256xf32> to vector<32x256xbf16>
    %c0_49 = arith.constant 0 : index
    %c0_50 = arith.constant 0 : index
    %c0_51 = arith.constant 0 : index
    %96 = vector.load %arg16[%c0_49, %c0_50, %c0_51] : memref<1x256x128xbf16, #tpu.memory_space<vmem>>, vector<1x256x128xbf16>
    %97 = vector.shape_cast %96 : vector<1x256x128xbf16> to vector<256x128xbf16>
    %cst_52 = arith.constant dense<0.000000e+00> : vector<32x128xf32>
    %98 = tpu.matmul %95, %97, %cst_52 {dimension_numbers = #tpu.dot_dimension_numbers<[1], [0], [0], [1], [0, 0, 1, 1], [], []>} : vector<32x256xbf16>, vector<256x128xbf16>, vector<32x128xf32> -> vector<32x128xf32>
    %c0_53 = arith.constant 0 : index
    %c0_54 = arith.constant 0 : index
    %c0_55 = arith.constant 0 : index
    %99 = vector.load %arg17[%c0_53, %c0_54, %c0_55] : memref<1x1x128xf32, #tpu.memory_space<vmem>>, vector<1x1x128xf32>
    %100 = vector.shape_cast %99 : vector<1x1x128xf32> to vector<1x128xf32>
    %101 = vector.broadcast %100 : vector<1x128xf32> to vector<32x128xf32>
    %102 = arith.addf %98, %101 : vector<32x128xf32>
    %103 = arith.addf %73, %102 : vector<32x128xf32>
    %c0_56 = arith.constant 0 : index
    %c0_57 = arith.constant 0 : index
    %c0_58 = arith.constant 0 : index
    %104 = vector.load %arg18[%c0_56, %c0_57, %c0_58] : memref<1x1x128xf32, #tpu.memory_space<vmem>>, vector<1x1x128xf32>
    %105 = vector.shape_cast %104 : vector<1x1x128xf32> to vector<1x128xf32>
    %c0_59 = arith.constant 0 : index
    %c0_60 = arith.constant 0 : index
    %c0_61 = arith.constant 0 : index
    %106 = vector.load %arg19[%c0_59, %c0_60, %c0_61] : memref<1x1x128xf32, #tpu.memory_space<vmem>>, vector<1x1x128xf32>
    %107 = vector.shape_cast %106 : vector<1x1x128xf32> to vector<1x128xf32>
    %cst_62 = arith.constant dense<0.000000e+00> : vector<32xf32>
    %108 = vector.multi_reduction <add>, %103, %cst_62 [1] : vector<32x128xf32> to vector<32xf32>
    %109 = vector.shape_cast %108 : vector<32xf32> to vector<32x1xf32>
    %cst_63 = arith.constant 1.280000e+02 : f32
    %110 = vector.broadcast %cst_63 : f32 to vector<32x1xf32>
    %111 = arith.divf %109, %110 : vector<32x1xf32>
    %112 = vector.broadcast %111 : vector<32x1xf32> to vector<32x128xf32>
    %113 = arith.subf %103, %112 : vector<32x128xf32>
    %114 = arith.mulf %113, %113 : vector<32x128xf32>
    %cst_64 = arith.constant dense<0.000000e+00> : vector<32xf32>
    %115 = vector.multi_reduction <add>, %114, %cst_64 [1] : vector<32x128xf32> to vector<32xf32>
    %116 = vector.shape_cast %115 : vector<32xf32> to vector<32x1xf32>
    %cst_65 = arith.constant 1.280000e+02 : f32
    %117 = vector.broadcast %cst_65 : f32 to vector<32x1xf32>
    %118 = arith.divf %116, %117 : vector<32x1xf32>
    %119 = vector.broadcast %111 : vector<32x1xf32> to vector<32x128xf32>
    %120 = arith.subf %103, %119 : vector<32x128xf32>
    %cst_66 = arith.constant 9.99999996E-13 : f32
    %121 = vector.broadcast %cst_66 : f32 to vector<32x1xf32>
    %122 = arith.addf %118, %121 : vector<32x1xf32>
    %123 = math.rsqrt %122 : vector<32x1xf32>
    %124 = vector.broadcast %123 : vector<32x1xf32> to vector<32x128xf32>
    %125 = arith.mulf %120, %124 : vector<32x128xf32>
    %126 = vector.broadcast %105 : vector<1x128xf32> to vector<32x128xf32>
    %127 = arith.mulf %125, %126 : vector<32x128xf32>
    %128 = vector.broadcast %107 : vector<1x128xf32> to vector<32x128xf32>
    %129 = arith.addf %127, %128 : vector<32x128xf32>
    %c0_67 = arith.constant 0 : index
    %c0_68 = arith.constant 0 : index
    %130 = vector.load %arg23[%c0_67, %c0_68] : memref<32x128xf32, #tpu.memory_space<vmem>>, vector<32x128xf32>
    tpu.vector_store %arg23[%c0_67, %c0_68], %129 {strides = array<i32>} : memref<32x128xf32, #tpu.memory_space<vmem>>, vector<32x128xf32>,
    %c1_i32 = arith.constant 1 : i32
    %131 = arith.cmpi eq, %arg0, %c1_i32 : i32
    %132 = arith.extui %131 : i1 to i32
    %c0_i32_69 = arith.constant 0 : i32
    %133 = arith.cmpi ne, %132, %c0_i32_69 : i32
    scf.if %133 {
      %134 = arith.truncf %129 : vector<32x128xf32> to vector<32x128xbf16>
      %c0_70 = arith.constant 0 : index
      %c0_71 = arith.constant 0 : index
      %135 = vector.load %arg20[%c0_70, %c0_71] : memref<128x128xbf16, #tpu.memory_space<vmem>>, vector<128x128xbf16>
      %cst_72 = arith.constant dense<0.000000e+00> : vector<32x128xf32>
      %136 = tpu.matmul %134, %135, %cst_72 {dimension_numbers = #tpu.dot_dimension_numbers<[1], [0], [0], [1], [0, 0, 1, 1], [], []>} : vector<32x128xbf16>, vector<128x128xbf16>, vector<32x128xf32> -> vector<32x128xf32>
      %c0_73 = arith.constant 0 : index
      %c0_74 = arith.constant 0 : index
      %137 = vector.load %arg21[%c0_73, %c0_74] : memref<1x128xf32, #tpu.memory_space<vmem>>, vector<1x128xf32>
      %138 = vector.broadcast %137 : vector<1x128xf32> to vector<32x128xf32>
      %139 = arith.addf %136, %138 : vector<32x128xf32>
      %c0_75 = arith.constant 0 : index
      %c0_76 = arith.constant 0 : index
      %140 = vector.load %arg22[%c0_75, %c0_76] : memref<32x128xf32, #tpu.memory_space<vmem>>, vector<32x128xf32>
      tpu.vector_store %arg22[%c0_75, %c0_76], %139 {strides = array<i32>} : memref<32x128xf32, #tpu.memory_space<vmem>>, vector<32x128xf32>,
    } else {
    }
    return
  }
  func.func @transform_0(%arg0: i32) -> (i32, i32) {
    %c0_i32 = arith.constant 0 : i32
    %c0_i32_0 = arith.constant 0 : i32
    %c0_i32_1 = arith.constant 0 : i32
    return %c0_i32, %c0_i32_0 : i32, i32
  }
  func.func @transform_1(%arg0: i32) -> (i32, i32) {
    %c0_i32 = arith.constant 0 : i32
    %c0_i32_0 = arith.constant 0 : i32
    %c0_i32_1 = arith.constant 0 : i32
    return %c0_i32, %c0_i32_0 : i32, i32
  }
  func.func @transform_2(%arg0: i32) -> (i32, i32) {
    %c0_i32 = arith.constant 0 : i32
    %c0_i32_0 = arith.constant 0 : i32
    %c0_i32_1 = arith.constant 0 : i32
    return %c0_i32, %c0_i32_0 : i32, i32
  }
  func.func @transform_3(%arg0: i32) -> (i32, i32) {
    %c0_i32 = arith.constant 0 : i32
    %c0_i32_0 = arith.constant 0 : i32
    %c0_i32_1 = arith.constant 0 : i32
    return %c0_i32, %c0_i32_0 : i32, i32
  }
  func.func @transform_4(%arg0: i32) -> (i32, i32) {
    %c0_i32 = arith.constant 0 : i32
    %c0_i32_0 = arith.constant 0 : i32
    %c0_i32_1 = arith.constant 0 : i32
    return %c0_i32, %c0_i32_0 : i32, i32
  }
  func.func @transform_5(%arg0: i32) -> (i32, i32) {
    %c0_i32 = arith.constant 0 : i32
    %c0_i32_0 = arith.constant 0 : i32
    %c0_i32_1 = arith.constant 0 : i32
    return %c0_i32, %c0_i32_0 : i32, i32
  }
  func.func @transform_6(%arg0: i32) -> (i32, i32) {
    %c0_i32 = arith.constant 0 : i32
    %c0_i32_0 = arith.constant 0 : i32
    %c0_i32_1 = arith.constant 0 : i32
    return %c0_i32, %c0_i32_0 : i32, i32
  }
  func.func @transform_7(%arg0: i32) -> (i32, i32, i32) {
    %c0_i32 = arith.constant 0 : i32
    %c0_i32_0 = arith.constant 0 : i32
    %c0_i32_1 = arith.constant 0 : i32
    return %arg0, %c0_i32, %c0_i32_0 : i32, i32, i32
  }
  func.func @transform_8(%arg0: i32) -> (i32, i32, i32) {
    %c0_i32 = arith.constant 0 : i32
    %c0_i32_0 = arith.constant 0 : i32
    %c0_i32_1 = arith.constant 0 : i32
    return %arg0, %c0_i32, %c0_i32_0 : i32, i32, i32
  }
  func.func @transform_9(%arg0: i32) -> (i32, i32, i32) {
    %c0_i32 = arith.constant 0 : i32
    %c0_i32_0 = arith.constant 0 : i32
    %c0_i32_1 = arith.constant 0 : i32
    return %arg0, %c0_i32, %c0_i32_0 : i32, i32, i32
  }
  func.func @transform_10(%arg0: i32) -> (i32, i32, i32) {
    %c0_i32 = arith.constant 0 : i32
    %c0_i32_0 = arith.constant 0 : i32
    %c0_i32_1 = arith.constant 0 : i32
    return %arg0, %c0_i32, %c0_i32_0 : i32, i32, i32
  }
  func.func @transform_11(%arg0: i32) -> (i32, i32, i32) {
    %c0_i32 = arith.constant 0 : i32
    %c0_i32_0 = arith.constant 0 : i32
    %c0_i32_1 = arith.constant 0 : i32
    return %arg0, %c0_i32, %c0_i32_0 : i32, i32, i32
  }
  func.func @transform_12(%arg0: i32) -> (i32, i32, i32) {
    %c0_i32 = arith.constant 0 : i32
    %c0_i32_0 = arith.constant 0 : i32
    %c0_i32_1 = arith.constant 0 : i32
    return %arg0, %c0_i32, %c0_i32_0 : i32, i32, i32
  }
  func.func @transform_13(%arg0: i32) -> (i32, i32, i32) {
    %c0_i32 = arith.constant 0 : i32
    %c0_i32_0 = arith.constant 0 : i32
    %c0_i32_1 = arith.constant 0 : i32
    return %arg0, %c0_i32, %c0_i32_0 : i32, i32, i32
  }
  func.func @transform_14(%arg0: i32) -> (i32, i32, i32) {
    %c0_i32 = arith.constant 0 : i32
    %c0_i32_0 = arith.constant 0 : i32
    %c0_i32_1 = arith.constant 0 : i32
    return %arg0, %c0_i32, %c0_i32_0 : i32, i32, i32
  }
  func.func @transform_15(%arg0: i32) -> (i32, i32, i32) {
    %c0_i32 = arith.constant 0 : i32
    %c0_i32_0 = arith.constant 0 : i32
    %c0_i32_1 = arith.constant 0 : i32
    return %arg0, %c0_i32, %c0_i32_0 : i32, i32, i32
  }
  func.func @transform_16(%arg0: i32) -> (i32, i32, i32) {
    %c0_i32 = arith.constant 0 : i32
    %c0_i32_0 = arith.constant 0 : i32
    %c0_i32_1 = arith.constant 0 : i32
    return %arg0, %c0_i32, %c0_i32_0 : i32, i32, i32
  }
  func.func @transform_17(%arg0: i32) -> (i32, i32, i32) {
    %c0_i32 = arith.constant 0 : i32
    %c0_i32_0 = arith.constant 0 : i32
    %c0_i32_1 = arith.constant 0 : i32
    return %arg0, %c0_i32, %c0_i32_0 : i32, i32, i32
  }
  func.func @transform_18(%arg0: i32) -> (i32, i32, i32) {
    %c0_i32 = arith.constant 0 : i32
    %c0_i32_0 = arith.constant 0 : i32
    %c0_i32_1 = arith.constant 0 : i32
    return %arg0, %c0_i32, %c0_i32_0 : i32, i32, i32
  }
  func.func @transform_19(%arg0: i32) -> (i32, i32) {
    %c0_i32 = arith.constant 0 : i32
    %c0_i32_0 = arith.constant 0 : i32
    %c0_i32_1 = arith.constant 0 : i32
    return %c0_i32, %c0_i32_0 : i32, i32
  }
  func.func @transform_20(%arg0: i32) -> (i32, i32) {
    %c0_i32 = arith.constant 0 : i32
    %c0_i32_0 = arith.constant 0 : i32
    %c0_i32_1 = arith.constant 0 : i32
    return %c0_i32, %c0_i32_0 : i32, i32
  }
  func.func @transform_21(%arg0: i32) -> (i32, i32) {
    %c0_i32 = arith.constant 0 : i32
    %c0_i32_0 = arith.constant 0 : i32
    %c0_i32_1 = arith.constant 0 : i32
    return %c0_i32, %c0_i32_0 : i32, i32
  }
}

</mosaic_0001>

<llo_original>
// kernel: encoder_text_forward.1
$region0: #{encoder_text_forward.1}
  #allocation0 [shape = 'u32[]', space=smem, size = 0x4, offset = 0x4, fixed_abs, tag = 'smem constant byte address 0x4 - core index']
  #allocation1 [shape = 'u32[144,128]{1,0:T(1,128)}', space=vmem, size = 0x12000, scoped, tag = 'internal scratch']
  #allocation2 [shape = 'f32[32,128]{1,0:T(8,128)}', space=vmem, size = 0x4000, scoped, tag = 'scratch operand']
  %s0 = inlined_call_operand.vmem [shape: f32[32,128], index: 0, kind: input, shape index: {}]
  %s1 = inlined_call_operand.vmem [shape: f32[32,128], index: 1, kind: input, shape index: {}]
  %s2 = inlined_call_operand.vmem [shape: f32[128,128], index: 2, kind: input, shape index: {}, may-alias: {2,3,4}]
  %s3 = inlined_call_operand.vmem [shape: f32[128,128], index: 3, kind: input, shape index: {}, may-alias: {2,3,4}]
  %s4 = inlined_call_operand.vmem [shape: f32[128,128], index: 4, kind: input, shape index: {}, may-alias: {2,3,4}]
  %s5 = inlined_call_operand.vmem [shape: f32[1,128], index: 5, kind: input, shape index: {}]
  %s6 = inlined_call_operand.vmem [shape: f32[1,128], index: 6, kind: input, shape index: {}]
  %s7 = inlined_call_operand.vmem [shape: bf16[2,128,384], index: 7, kind: input, shape index: {}]
  %s8 = inlined_call_operand.vmem [shape: f32[2,1,384], index: 8, kind: input, shape index: {}]
  %s9 = inlined_call_operand.vmem [shape: bf16[2,128,128], index: 9, kind: input, shape index: {}]
  %s10 = inlined_call_operand.vmem [shape: f32[2,1,128], index: 10, kind: input, shape index: {}]
  %s11 = inlined_call_operand.vmem [shape: f32[2,1,128], index: 11, kind: input, shape index: {}]
  %s12 = inlined_call_operand.vmem [shape: f32[2,1,128], index: 12, kind: input, shape index: {}]
  %s13 = inlined_call_operand.vmem [shape: bf16[2,128,256], index: 13, kind: input, shape index: {}]
  %s14 = inlined_call_operand.vmem [shape: f32[2,1,256], index: 14, kind: input, shape index: {}]
  %s15 = inlined_call_operand.vmem [shape: bf16[2,256,128], index: 15, kind: input, shape index: {}]
  %s16 = inlined_call_operand.vmem [shape: f32[2,1,128], index: 16, kind: input, shape index: {}]
  %s17 = inlined_call_operand.vmem [shape: f32[2,1,128], index: 17, kind: input, shape index: {}]
  %s18 = inlined_call_operand.vmem [shape: f32[2,1,128], index: 18, kind: input, shape index: {}]
  %s19 = inlined_call_operand.vmem [shape: bf16[128,128], index: 19, kind: input, shape index: {}]
  %s20 = inlined_call_operand.vmem [shape: f32[1,128], index: 20, kind: input, shape index: {}]
  %s21 = inlined_call_operand.hbm [shape: f32[32,128], index: 21, kind: output, shape index: {}]
  %s22 = sld [smem:[#allocation0]]
  $region125: #{encoder_text_forward.1} parent=0
    _
  %s24 = ssub.s32 1, %s22
  %s25 = scalar_select 0, %s24, %s22
  $region1: #{encoder_text_forward.1} parent=0
    #allocation3 [shape = 'u8[16384]{0}', space=vmem, size = 0x4000, scoped, tag = 'output window, operand 0, single buffered']
    #allocation4 [shape = 's32[2]{0}', space=sflag, size = 0x8, scoped, tag = 'scoped memory for encoder_text_forward.1']
    %26 = vsyncpa [#allocation4], 0
    loop: start=0, step=1, limit=4
    $region2: #{encoder_text_forward.1} parent=1 // loop_pre_header
      _
    $region3: #{encoder_text_forward.1} parent=1 // loop_header
      %s28 = sphi 0, %s32
      %p29 = scmp.ge.s32.totalorder %s28, 4
      %s36 = sphi 0, %s36
      %s38 = sphi 0, %s36
      %s39 = sphi 0, %s38
      %s53 = sphi 0, %s39
      %s57 = sphi 0, %s57
      %s59 = sphi 0, %s57
      %s60 = sphi 0, %s59
      %s74 = sphi 0, %s60
      %s78 = sphi 0, %s78
      %s80 = sphi 0, %s78
      %s81 = sphi 0, %s80
      %s95 = sphi 0, %s81
      %s99 = sphi 0, %s99
      %s101 = sphi 0, %s99
      %s102 = sphi 0, %s101
      %s116 = sphi 0, %s102
      %s120 = sphi 0, %s120
      %s122 = sphi 0, %s120
      %s123 = sphi 0, %s122
      %s137 = sphi 0, %s123
      %s141 = sphi 0, %s141
      %s143 = sphi 0, %s141
      %s144 = sphi 0, %s143
      %s158 = sphi 0, %s144
      %s162 = sphi 0, %s162
      %s164 = sphi 0, %s162
      %s165 = sphi 0, %s164
      %s179 = sphi 0, %s165
      %s185 = sphi 0, %s187
      %s188 = sphi 0, %s185
      %s189 = sphi 0, %s188
      %s205 = sphi 0, %s189
      %s211 = sphi 0, %s213
      %s214 = sphi 0, %s211
      %s215 = sphi 0, %s214
      %s231 = sphi 0, %s215
      %s237 = sphi 0, %s239
      %s240 = sphi 0, %s237
      %s241 = sphi 0, %s240
      %s257 = sphi 0, %s241
      %s263 = sphi 0, %s265
      %s266 = sphi 0, %s263
      %s267 = sphi 0, %s266
      %s283 = sphi 0, %s267
      %s289 = sphi 0, %s291
      %s292 = sphi 0, %s289
      %s293 = sphi 0, %s292
      %s309 = sphi 0, %s293
      %s315 = sphi 0, %s317
      %s318 = sphi 0, %s315
      %s319 = sphi 0, %s318
      %s335 = sphi 0, %s319
      %s341 = sphi 0, %s343
      %s344 = sphi 0, %s341
      %s345 = sphi 0, %s344
      %s361 = sphi 0, %s345
      %s367 = sphi 0, %s369
      %s370 = sphi 0, %s367
      %s371 = sphi 0, %s370
      %s387 = sphi 0, %s371
      %s393 = sphi 0, %s395
      %s396 = sphi 0, %s393
      %s397 = sphi 0, %s396
      %s413 = sphi 0, %s397
      %s419 = sphi 0, %s421
      %s422 = sphi 0, %s419
      %s423 = sphi 0, %s422
      %s439 = sphi 0, %s423
      %s445 = sphi 0, %s447
      %s448 = sphi 0, %s445
      %s449 = sphi 0, %s448
      %s465 = sphi 0, %s449
      %s471 = sphi 0, %s473
      %s474 = sphi 0, %s471
      %s475 = sphi 0, %s474
      %s491 = sphi 0, %s475
      %s495 = sphi 0, %s495
      %s497 = sphi 0, %s495
      %s498 = sphi 0, %s497
      %s512 = sphi 0, %s498
      %s516 = sphi 0, %s516
      %s518 = sphi 0, %s516
      %s519 = sphi 0, %s518
      %s533 = sphi 0, %s519
      %s537 = sphi 0, %s537
      %s539 = sphi 0, %s537
      %s540 = sphi 0, %s539
      %s554 = sphi 0, %s540
    $region4: #{encoder_text_forward.1} parent=1 // loop_header_branch
      %31 = sbr.rel (%p29) target = $region8
    $region5: #{encoder_text_forward.1} parent=1 // loop_body
      %s33 = ssub.s32 %s28, 1
      %s34 = ssub.s32 %s28, 2
      %s35 = sadd.s32 %s28, 1
      %s37 = sadd.s32 %s36, 1
      %p40 = scmp.eq.s32.totalorder %s28, 1
      %p41 = scmp.ne.s32.totalorder %s36, %s38
      %p42 = scmp.eq.s32.totalorder %s28, 0
      %p43 = por %p41, %p42
      %p44 = scmp.ne.s32.totalorder %s36, %s38
      %p45 = scmp.eq.s32.totalorder %s33, 1
      %p46 = por %p44, %p45
      %p47 = scmp.ne.s32.totalorder %s38, %s39
      %p48 = scmp.eq.s32.totalorder %s33, 0
      %p49 = por %p47, %p48
      %p50 = scmp.ne.s32.totalorder %s38, %s39
      %p51 = scmp.eq.s32.totalorder %s34, 1
      %p52 = por %p50, %p51
      %p54 = scmp.ne.s32.totalorder %s39, %s53
      %p55 = scmp.eq.s32.totalorder %s34, 0
      %p56 = por %p54, %p55
      %s58 = sadd.s32 %s57, 1
      %p61 = scmp.eq.s32.totalorder %s28, 1
      %p62 = scmp.ne.s32.totalorder %s57, %s59
      %p63 = scmp.eq.s32.totalorder %s28, 0
      %p64 = por %p62, %p63
      %p65 = scmp.ne.s32.totalorder %s57, %s59
      %p66 = scmp.eq.s32.totalorder %s33, 1
      %p67 = por %p65, %p66
      %p68 = scmp.ne.s32.totalorder %s59, %s60
      %p69 = scmp.eq.s32.totalorder %s33, 0
      %p70 = por %p68, %p69
      %p71 = scmp.ne.s32.totalorder %s59, %s60
      %p72 = scmp.eq.s32.totalorder %s34, 1
      %p73 = por %p71, %p72
      %p75 = scmp.ne.s32.totalorder %s60, %s74
      %p76 = scmp.eq.s32.totalorder %s34, 0
      %p77 = por %p75, %p76
      %s79 = sadd.s32 %s78, 1
      %p82 = scmp.eq.s32.totalorder %s28, 1
      %p83 = scmp.ne.s32.totalorder %s78, %s80
      %p84 = scmp.eq.s32.totalorder %s28, 0
      %p85 = por %p83, %p84
      %p86 = scmp.ne.s32.totalorder %s78, %s80
      %p87 = scmp.eq.s32.totalorder %s33, 1
      %p88 = por %p86, %p87
      %p89 = scmp.ne.s32.totalorder %s80, %s81
      %p90 = scmp.eq.s32.totalorder %s33, 0
      %p91 = por %p89, %p90
      %p92 = scmp.ne.s32.totalorder %s80, %s81
      %p93 = scmp.eq.s32.totalorder %s34, 1
      %p94 = por %p92, %p93
      %p96 = scmp.ne.s32.totalorder %s81, %s95
      %p97 = scmp.eq.s32.totalorder %s34, 0
      %p98 = por %p96, %p97
      %s100 = sadd.s32 %s99, 1
      %p103 = scmp.eq.s32.totalorder %s28, 1
      %p104 = scmp.ne.s32.totalorder %s99, %s101
      %p105 = scmp.eq.s32.totalorder %s28, 0
      %p106 = por %p104, %p105
      %p107 = scmp.ne.s32.totalorder %s99, %s101
      %p108 = scmp.eq.s32.totalorder %s33, 1
      %p109 = por %p107, %p108
      %p110 = scmp.ne.s32.totalorder %s101, %s102
      %p111 = scmp.eq.s32.totalorder %s33, 0
      %p112 = por %p110, %p111
      %p113 = scmp.ne.s32.totalorder %s101, %s102
      %p114 = scmp.eq.s32.totalorder %s34, 1
      %p115 = por %p113, %p114
      %p117 = scmp.ne.s32.totalorder %s102, %s116
      %p118 = scmp.eq.s32.totalorder %s34, 0
      %p119 = por %p117, %p118
      %s121 = sadd.s32 %s120, 1
      %p124 = scmp.eq.s32.totalorder %s28, 1
      %p125 = scmp.ne.s32.totalorder %s120, %s122
      %p126 = scmp.eq.s32.totalorder %s28, 0
      %p127 = por %p125, %p126
      %p128 = scmp.ne.s32.totalorder %s120, %s122
      %p129 = scmp.eq.s32.totalorder %s33, 1
      %p130 = por %p128, %p129
      %p131 = scmp.ne.s32.totalorder %s122, %s123
      %p132 = scmp.eq.s32.totalorder %s33, 0
      %p133 = por %p131, %p132
      %p134 = scmp.ne.s32.totalorder %s122, %s123
      %p135 = scmp.eq.s32.totalorder %s34, 1
      %p136 = por %p134, %p135
      %p138 = scmp.ne.s32.totalorder %s123, %s137
      %p139 = scmp.eq.s32.totalorder %s34, 0
      %p140 = por %p138, %p139
      %s142 = sadd.s32 %s141, 1
      %p145 = scmp.eq.s32.totalorder %s28, 1
      %p146 = scmp.ne.s32.totalorder %s141, %s143
      %p147 = scmp.eq.s32.totalorder %s28, 0
      %p148 = por %p146, %p147
      %p149 = scmp.ne.s32.totalorder %s141, %s143
      %p150 = scmp.eq.s32.totalorder %s33, 1
      %p151 = por %p149, %p150
      %p152 = scmp.ne.s32.totalorder %s143, %s144
      %p153 = scmp.eq.s32.totalorder %s33, 0
      %p154 = por %p152, %p153
      %p155 = scmp.ne.s32.totalorder %s143, %s144
      %p156 = scmp.eq.s32.totalorder %s34, 1
      %p157 = por %p155, %p156
      %p159 = scmp.ne.s32.totalorder %s144, %s158
      %p160 = scmp.eq.s32.totalorder %s34, 0
      %p161 = por %p159, %p160
      %s163 = sadd.s32 %s162, 1
      %p166 = scmp.eq.s32.totalorder %s28, 1
      %p167 = scmp.ne.s32.totalorder %s162, %s164
      %p168 = scmp.eq.s32.totalorder %s28, 0
      %p169 = por %p167, %p168
      %p170 = scmp.ne.s32.totalorder %s162, %s164
      %p171 = scmp.eq.s32.totalorder %s33, 1
      %p172 = por %p170, %p171
      %p173 = scmp.ne.s32.totalorder %s164, %s165
      %p174 = scmp.eq.s32.totalorder %s33, 0
      %p175 = por %p173, %p174
      %p176 = scmp.ne.s32.totalorder %s164, %s165
      %p177 = scmp.eq.s32.totalorder %s34, 1
      %p178 = por %p176, %p177
      %p180 = scmp.ne.s32.totalorder %s165, %s179
      %p181 = scmp.eq.s32.totalorder %s34, 0
      %p182 = por %p180, %p181
      %s183 = ssub.s32 %s28, %s35
      %p184 = scmp.eq.s32.totalorder %s183, 0
      %s186 = sadd.s32 %s185, 1
      %s187 = scalar_select %p184, %s185, %s186
      %p190 = pneg %p184
      %p191 = scmp.eq.s32.totalorder %s28, 1
      %p192 = por %p190, %p191
      %p193 = scmp.ne.s32.totalorder %s185, %s188
      %p194 = scmp.eq.s32.totalorder %s28, 0
      %p195 = por %p193, %p194
      %p196 = scmp.ne.s32.totalorder %s185, %s188
      %p197 = scmp.eq.s32.totalorder %s33, 1
      %p198 = por %p196, %p197
      %p199 = scmp.ne.s32.totalorder %s188, %s189
      %p200 = scmp.eq.s32.totalorder %s33, 0
      %p201 = por %p199, %p200
      %p202 = scmp.ne.s32.totalorder %s188, %s189
      %p203 = scmp.eq.s32.totalorder %s34, 1
      %p204 = por %p202, %p203
      %p206 = scmp.ne.s32.totalorder %s189, %s205
      %p207 = scmp.eq.s32.totalorder %s34, 0
      %p208 = por %p206, %p207
      %s209 = ssub.s32 %s28, %s35
      %p210 = scmp.eq.s32.totalorder %s209, 0
      %s212 = sadd.s32 %s211, 1
      %s213 = scalar_select %p210, %s211, %s212
      %p216 = pneg %p210
      %p217 = scmp.eq.s32.totalorder %s28, 1
      %p218 = por %p216, %p217
      %p219 = scmp.ne.s32.totalorder %s211, %s214
      %p220 = scmp.eq.s32.totalorder %s28, 0
      %p221 = por %p219, %p220
      %p222 = scmp.ne.s32.totalorder %s211, %s214
      %p223 = scmp.eq.s32.totalorder %s33, 1
      %p224 = por %p222, %p223
      %p225 = scmp.ne.s32.totalorder %s214, %s215
      %p226 = scmp.eq.s32.totalorder %s33, 0
      %p227 = por %p225, %p226
      %p228 = scmp.ne.s32.totalorder %s214, %s215
      %p229 = scmp.eq.s32.totalorder %s34, 1
      %p230 = por %p228, %p229
      %p232 = scmp.ne.s32.totalorder %s215, %s231
      %p233 = scmp.eq.s32.totalorder %s34, 0
      %p234 = por %p232, %p233
      %s235 = ssub.s32 %s28, %s35
      %p236 = scmp.eq.s32.totalorder %s235, 0
      %s238 = sadd.s32 %s237, 1
      %s239 = scalar_select %p236, %s237, %s238
      %p242 = pneg %p236
      %p243 = scmp.eq.s32.totalorder %s28, 1
      %p244 = por %p242, %p243
      %p245 = scmp.ne.s32.totalorder %s237, %s240
      %p246 = scmp.eq.s32.totalorder %s28, 0
      %p247 = por %p245, %p246
      %p248 = scmp.ne.s32.totalorder %s237, %s240
      %p249 = scmp.eq.s32.totalorder %s33, 1
      %p250 = por %p248, %p249
      %p251 = scmp.ne.s32.totalorder %s240, %s241
      %p252 = scmp.eq.s32.totalorder %s33, 0
      %p253 = por %p251, %p252
      %p254 = scmp.ne.s32.totalorder %s240, %s241
      %p255 = scmp.eq.s32.totalorder %s34, 1
      %p256 = por %p254, %p255
      %p258 = scmp.ne.s32.totalorder %s241, %s257
      %p259 = scmp.eq.s32.totalorder %s34, 0
      %p260 = por %p258, %p259
      %s261 = ssub.s32 %s28, %s35
      %p262 = scmp.eq.s32.totalorder %s261, 0
      %s264 = sadd.s32 %s263, 1
      %s265 = scalar_select %p262, %s263, %s264
      %p268 = pneg %p262
      %p269 = scmp.eq.s32.totalorder %s28, 1
      %p270 = por %p268, %p269
      %p271 = scmp.ne.s32.totalorder %s263, %s266
      %p272 = scmp.eq.s32.totalorder %s28, 0
      %p273 = por %p271, %p272
      %p274 = scmp.ne.s32.totalorder %s263, %s266
      %p275 = scmp.eq.s32.totalorder %s33, 1
      %p276 = por %p274, %p275
      %p277 = scmp.ne.s32.totalorder %s266, %s267
      %p278 = scmp.eq.s32.totalorder %s33, 0
      %p279 = por %p277, %p278
      %p280 = scmp.ne.s32.totalorder %s266, %s267
      %p281 = scmp.eq.s32.totalorder %s34, 1
      %p282 = por %p280, %p281
      %p284 = scmp.ne.s32.totalorder %s267, %s283
      %p285 = scmp.eq.s32.totalorder %s34, 0
      %p286 = por %p284, %p285
      %s287 = ssub.s32 %s28, %s35
      %p288 = scmp.eq.s32.totalorder %s287, 0
      %s290 = sadd.s32 %s289, 1
      %s291 = scalar_select %p288, %s289, %s290
      %p294 = pneg %p288
      %p295 = scmp.eq.s32.totalorder %s28, 1
      %p296 = por %p294, %p295
      %p297 = scmp.ne.s32.totalorder %s289, %s292
      %p298 = scmp.eq.s32.totalorder %s28, 0
      %p299 = por %p297, %p298
      %p300 = scmp.ne.s32.totalorder %s289, %s292
      %p301 = scmp.eq.s32.totalorder %s33, 1
      %p302 = por %p300, %p301
      %p303 = scmp.ne.s32.totalorder %s292, %s293
      %p304 = scmp.eq.s32.totalorder %s33, 0
      %p305 = por %p303, %p304
      %p306 = scmp.ne.s32.totalorder %s292, %s293
      %p307 = scmp.eq.s32.totalorder %s34, 1
      %p308 = por %p306, %p307
      %p310 = scmp.ne.s32.totalorder %s293, %s309
      %p311 = scmp.eq.s32.totalorder %s34, 0
      %p312 = por %p310, %p311
      %s313 = ssub.s32 %s28, %s35
      %p314 = scmp.eq.s32.totalorder %s313, 0
      %s316 = sadd.s32 %s315, 1
      %s317 = scalar_select %p314, %s315, %s316
      %p320 = pneg %p314
      %p321 = scmp.eq.s32.totalorder %s28, 1
      %p322 = por %p320, %p321
      %p323 = scmp.ne.s32.totalorder %s315, %s318
      %p324 = scmp.eq.s32.totalorder %s28, 0
      %p325 = por %p323, %p324
      %p326 = scmp.ne.s32.totalorder %s315, %s318
      %p327 = scmp.eq.s32.totalorder %s33, 1
      %p328 = por %p326, %p327
      %p329 = scmp.ne.s32.totalorder %s318, %s319
      %p330 = scmp.eq.s32.totalorder %s33, 0
      %p331 = por %p329, %p330
      %p332 = scmp.ne.s32.totalorder %s318, %s319
      %p333 = scmp.eq.s32.totalorder %s34, 1
      %p334 = por %p332, %p333
      %p336 = scmp.ne.s32.totalorder %s319, %s335
      %p337 = scmp.eq.s32.totalorder %s34, 0
      %p338 = por %p336, %p337
      %s339 = ssub.s32 %s28, %s35
      %p340 = scmp.eq.s32.totalorder %s339, 0
      %s342 = sadd.s32 %s341, 1
      %s343 = scalar_select %p340, %s341, %s342
      %p346 = pneg %p340
      %p347 = scmp.eq.s32.totalorder %s28, 1
      %p348 = por %p346, %p347
      %p349 = scmp.ne.s32.totalorder %s341, %s344
      %p350 = scmp.eq.s32.totalorder %s28, 0
      %p351 = por %p349, %p350
      %p352 = scmp.ne.s32.totalorder %s341, %s344
      %p353 = scmp.eq.s32.totalorder %s33, 1
      %p354 = por %p352, %p353
      %p355 = scmp.ne.s32.totalorder %s344, %s345
      %p356 = scmp.eq.s32.totalorder %s33, 0
      %p357 = por %p355, %p356
      %p358 = scmp.ne.s32.totalorder %s344, %s345
      %p359 = scmp.eq.s32.totalorder %s34, 1
      %p360 = por %p358, %p359
      %p362 = scmp.ne.s32.totalorder %s345, %s361
      %p363 = scmp.eq.s32.totalorder %s34, 0
      %p364 = por %p362, %p363
      %s365 = ssub.s32 %s28, %s35
      %p366 = scmp.eq.s32.totalorder %s365, 0
      %s368 = sadd.s32 %s367, 1
      %s369 = scalar_select %p366, %s367, %s368
      %p372 = pneg %p366
      %p373 = scmp.eq.s32.totalorder %s28, 1
      %p374 = por %p372, %p373
      %p375 = scmp.ne.s32.totalorder %s367, %s370
      %p376 = scmp.eq.s32.totalorder %s28, 0
      %p377 = por %p375, %p376
      %p378 = scmp.ne.s32.totalorder %s367, %s370
      %p379 = scmp.eq.s32.totalorder %s33, 1
      %p380 = por %p378, %p379
      %p381 = scmp.ne.s32.totalorder %s370, %s371
      %p382 = scmp.eq.s32.totalorder %s33, 0
      %p383 = por %p381, %p382
      %p384 = scmp.ne.s32.totalorder %s370, %s371
      %p385 = scmp.eq.s32.totalorder %s34, 1
      %p386 = por %p384, %p385
      %p388 = scmp.ne.s32.totalorder %s371, %s387
      %p389 = scmp.eq.s32.totalorder %s34, 0
      %p390 = por %p388, %p389
      %s391 = ssub.s32 %s28, %s35
      %p392 = scmp.eq.s32.totalorder %s391, 0
      %s394 = sadd.s32 %s393, 1
      %s395 = scalar_select %p392, %s393, %s394
      %p398 = pneg %p392
      %p399 = scmp.eq.s32.totalorder %s28, 1
      %p400 = por %p398, %p399
      %p401 = scmp.ne.s32.totalorder %s393, %s396
      %p402 = scmp.eq.s32.totalorder %s28, 0
      %p403 = por %p401, %p402
      %p404 = scmp.ne.s32.totalorder %s393, %s396
      %p405 = scmp.eq.s32.totalorder %s33, 1
      %p406 = por %p404, %p405
      %p407 = scmp.ne.s32.totalorder %s396, %s397
      %p408 = scmp.eq.s32.totalorder %s33, 0
      %p409 = por %p407, %p408
      %p410 = scmp.ne.s32.totalorder %s396, %s397
      %p411 = scmp.eq.s32.totalorder %s34, 1
      %p412 = por %p410, %p411
      %p414 = scmp.ne.s32.totalorder %s397, %s413
      %p415 = scmp.eq.s32.totalorder %s34, 0
      %p416 = por %p414, %p415
      %s417 = ssub.s32 %s28, %s35
      %p418 = scmp.eq.s32.totalorder %s417, 0
      %s420 = sadd.s32 %s419, 1
      %s421 = scalar_select %p418, %s419, %s420
      %p424 = pneg %p418
      %p425 = scmp.eq.s32.totalorder %s28, 1
      %p426 = por %p424, %p425
      %p427 = scmp.ne.s32.totalorder %s419, %s422
      %p428 = scmp.eq.s32.totalorder %s28, 0
      %p429 = por %p427, %p428
      %p430 = scmp.ne.s32.totalorder %s419, %s422
      %p431 = scmp.eq.s32.totalorder %s33, 1
      %p432 = por %p430, %p431
      %p433 = scmp.ne.s32.totalorder %s422, %s423
      %p434 = scmp.eq.s32.totalorder %s33, 0
      %p435 = por %p433, %p434
      %p436 = scmp.ne.s32.totalorder %s422, %s423
      %p437 = scmp.eq.s32.totalorder %s34, 1
      %p438 = por %p436, %p437
      %p440 = scmp.ne.s32.totalorder %s423, %s439
      %p441 = scmp.eq.s32.totalorder %s34, 0
      %p442 = por %p440, %p441
      %s443 = ssub.s32 %s28, %s35
      %p444 = scmp.eq.s32.totalorder %s443, 0
      %s446 = sadd.s32 %s445, 1
      %s447 = scalar_select %p444, %s445, %s446
      %p450 = pneg %p444
      %p451 = scmp.eq.s32.totalorder %s28, 1
      %p452 = por %p450, %p451
      %p453 = scmp.ne.s32.totalorder %s445, %s448
      %p454 = scmp.eq.s32.totalorder %s28, 0
      %p455 = por %p453, %p454
      %p456 = scmp.ne.s32.totalorder %s445, %s448
      %p457 = scmp.eq.s32.totalorder %s33, 1
      %p458 = por %p456, %p457
      %p459 = scmp.ne.s32.totalorder %s448, %s449
      %p460 = scmp.eq.s32.totalorder %s33, 0
      %p461 = por %p459, %p460
      %p462 = scmp.ne.s32.totalorder %s448, %s449
      %p463 = scmp.eq.s32.totalorder %s34, 1
      %p464 = por %p462, %p463
      %p466 = scmp.ne.s32.totalorder %s449, %s465
      %p467 = scmp.eq.s32.totalorder %s34, 0
      %p468 = por %p466, %p467
      %s469 = ssub.s32 %s28, %s35
      %p470 = scmp.eq.s32.totalorder %s469, 0
      %s472 = sadd.s32 %s471, 1
      %s473 = scalar_select %p470, %s471, %s472
      %p476 = pneg %p470
      %p477 = scmp.eq.s32.totalorder %s28, 1
      %p478 = por %p476, %p477
      %p479 = scmp.ne.s32.totalorder %s471, %s474
      %p480 = scmp.eq.s32.totalorder %s28, 0
      %p481 = por %p479, %p480
      %p482 = scmp.ne.s32.totalorder %s471, %s474
      %p483 = scmp.eq.s32.totalorder %s33, 1
      %p484 = por %p482, %p483
      %p485 = scmp.ne.s32.totalorder %s474, %s475
      %p486 = scmp.eq.s32.totalorder %s33, 0
      %p487 = por %p485, %p486
      %p488 = scmp.ne.s32.totalorder %s474, %s475
      %p489 = scmp.eq.s32.totalorder %s34, 1
      %p490 = por %p488, %p489
      %p492 = scmp.ne.s32.totalorder %s475, %s491
      %p493 = scmp.eq.s32.totalorder %s34, 0
      %p494 = por %p492, %p493
      %s496 = sadd.s32 %s495, 1
      %p499 = scmp.eq.s32.totalorder %s28, 1
      %p500 = scmp.ne.s32.totalorder %s495, %s497
      %p501 = scmp.eq.s32.totalorder %s28, 0
      %p502 = por %p500, %p501
      %p503 = scmp.ne.s32.totalorder %s495, %s497
      %p504 = scmp.eq.s32.totalorder %s33, 1
      %p505 = por %p503, %p504
      %p506 = scmp.ne.s32.totalorder %s497, %s498
      %p507 = scmp.eq.s32.totalorder %s33, 0
      %p508 = por %p506, %p507
      %p509 = scmp.ne.s32.totalorder %s497, %s498
      %p510 = scmp.eq.s32.totalorder %s34, 1
      %p511 = por %p509, %p510
      %p513 = scmp.ne.s32.totalorder %s498, %s512
      %p514 = scmp.eq.s32.totalorder %s34, 0
      %p515 = por %p513, %p514
      %s517 = sadd.s32 %s516, 1
      %p520 = scmp.eq.s32.totalorder %s28, 1
      %p521 = scmp.ne.s32.totalorder %s516, %s518
      %p522 = scmp.eq.s32.totalorder %s28, 0
      %p523 = por %p521, %p522
      %p524 = scmp.ne.s32.totalorder %s516, %s518
      %p525 = scmp.eq.s32.totalorder %s33, 1
      %p526 = por %p524, %p525
      %p527 = scmp.ne.s32.totalorder %s518, %s519
      %p528 = scmp.eq.s32.totalorder %s33, 0
      %p529 = por %p527, %p528
      %p530 = scmp.ne.s32.totalorder %s518, %s519
      %p531 = scmp.eq.s32.totalorder %s34, 1
      %p532 = por %p530, %p531
      %p534 = scmp.ne.s32.totalorder %s519, %s533
      %p535 = scmp.eq.s32.totalorder %s34, 0
      %p536 = por %p534, %p535
      %s538 = sadd.s32 %s537, 1
      %p541 = scmp.eq.s32.totalorder %s28, 1
      %p542 = scmp.ne.s32.totalorder %s537, %s539
      %p543 = scmp.eq.s32.totalorder %s28, 0
      %p544 = por %p542, %p543
      %p545 = scmp.ne.s32.totalorder %s537, %s539
      %p546 = scmp.eq.s32.totalorder %s33, 1
      %p547 = por %p545, %p546
      %p548 = scmp.ne.s32.totalorder %s539, %s540
      %p549 = scmp.eq.s32.totalorder %s33, 0
      %p550 = por %p548, %p549
      %p551 = scmp.ne.s32.totalorder %s539, %s540
      %p552 = scmp.eq.s32.totalorder %s34, 1
      %p553 = por %p551, %p552
      %p555 = scmp.ne.s32.totalorder %s540, %s554
      %p556 = scmp.eq.s32.totalorder %s34, 0
      %p557 = por %p555, %p556
      %p558 = scmp.le.s32.totalorder 1, %s28
      %p559 = scmp.lt.s32.totalorder %s28, 3
      %p560 = pnand %p558, %p559
      %p561 = pneg %p560
      // Predicated region
      $region9: #{encoder_text_forward.1} parent=5 // pred_check
        _
      $region10: #{encoder_text_forward.1} parent=5 // pred_check_branch
        %563 = sbr.rel (%p560) target = $region12
      $region11: #{encoder_text_forward.1} parent=5 // pred_region
        %s564 = ssub.s32 %s28, 1
        // Predicated region
        $region13: #{encoder_text_forward.1} parent=11 // pred_check
          %p565 = pneg %p49
        $region14: #{encoder_text_forward.1} parent=11 // pred_check_branch
          %567 = sbr.rel (%p565) target = $region16
        $region15: #{encoder_text_forward.1} parent=11 // pred_region
          _
        $region16: #{encoder_text_forward.1} parent=11 // pred_fallthru
          _
        // Predicated region
        $region17: #{encoder_text_forward.1} parent=11 // pred_check
          %p568 = pneg %p70
        $region18: #{encoder_text_forward.1} parent=11 // pred_check_branch
          %570 = sbr.rel (%p568) target = $region20
        $region19: #{encoder_text_forward.1} parent=11 // pred_region
          _
        $region20: #{encoder_text_forward.1} parent=11 // pred_fallthru
          _
        // Predicated region
        $region21: #{encoder_text_forward.1} parent=11 // pred_check
          %p571 = pneg %p91
        $region22: #{encoder_text_forward.1} parent=11 // pred_check_branch
          %573 = sbr.rel (%p571) target = $region24
        $region23: #{encoder_text_forward.1} parent=11 // pred_region
          _
        $region24: #{encoder_text_forward.1} parent=11 // pred_fallthru
          _
        // Predicated region
        $region25: #{encoder_text_forward.1} parent=11 // pred_check
          %p574 = pneg %p112
        $region26: #{encoder_text_forward.1} parent=11 // pred_check_branch
          %576 = sbr.rel (%p574) target = $region28
        $region27: #{encoder_text_forward.1} parent=11 // pred_region
          _
        $region28: #{encoder_text_forward.1} parent=11 // pred_fallthru
          _
        // Predicated region
        $region29: #{encoder_text_forward.1} parent=11 // pred_check
          %p577 = pneg %p133
        $region30: #{encoder_text_forward.1} parent=11 // pred_check_branch
          %579 = sbr.rel (%p577) target = $region32
        $region31: #{encoder_text_forward.1} parent=11 // pred_region
          _
        $region32: #{encoder_text_forward.1} parent=11 // pred_fallthru
          _
        // Predicated region
        $region33: #{encoder_text_forward.1} parent=11 // pred_check
          %p580 = pneg %p154
        $region34: #{encoder_text_forward.1} parent=11 // pred_check_branch
          %582 = sbr.rel (%p580) target = $region36
        $region35: #{encoder_text_forward.1} parent=11 // pred_region
          _
        $region36: #{encoder_text_forward.1} parent=11 // pred_fallthru
          _
        // Predicated region
        $region37: #{encoder_text_forward.1} parent=11 // pred_check
          %p583 = pneg %p175
        $region38: #{encoder_text_forward.1} parent=11 // pred_check_branch
          %585 = sbr.rel (%p583) target = $region40
        $region39: #{encoder_text_forward.1} parent=11 // pred_region
          _
        $region40: #{encoder_text_forward.1} parent=11 // pred_fallthru
          _
        // Predicated region
        $region41: #{encoder_text_forward.1} parent=11 // pred_check
          %p586 = pneg %p508
        $region42: #{encoder_text_forward.1} parent=11 // pred_check_branch
          %588 = sbr.rel (%p586) target = $region44
        $region43: #{encoder_text_forward.1} parent=11 // pred_region
          _
        $region44: #{encoder_text_forward.1} parent=11 // pred_fallthru
          _
        // Predicated region
        $region45: #{encoder_text_forward.1} parent=11 // pred_check
          %p589 = pneg %p529
        $region46: #{encoder_text_forward.1} parent=11 // pred_check_branch
          %591 = sbr.rel (%p589) target = $region48
        $region47: #{encoder_text_forward.1} parent=11 // pred_region
          _
        $region48: #{encoder_text_forward.1} parent=11 // pred_fallthru
          _
      $region12: #{encoder_text_forward.1} parent=5 // pred_fallthru
        _
      %p592 = scmp.lt.s32.totalorder %s28, 2
      // Predicated region
      $region49: #{encoder_text_forward.1} parent=5 // pred_check
        %p593 = pneg %p592
      $region50: #{encoder_text_forward.1} parent=5 // pred_check_branch
        %595 = sbr.rel (%p593) target = $region52
      $region51: #{encoder_text_forward.1} parent=5 // pred_region
        // Predicated region
        $region53: #{encoder_text_forward.1} parent=51 // pred_check
          %p596 = pneg %p195
        $region54: #{encoder_text_forward.1} parent=51 // pred_check_branch
          %598 = sbr.rel (%p596) target = $region56
        $region55: #{encoder_text_forward.1} parent=51 // pred_region
          %p599 = scmp.lt.s32.totalorder %s28, 1
          %s600 = scalar_select %p599, %s28, 1
          %s601 = smul.addr %s600, 48
          %s602 = smul.addr %s601, 4
          %s603 = scalar_lea.vmem %s7, %s602
        $region56: #{encoder_text_forward.1} parent=51 // pred_fallthru
          _
        // Predicated region
        $region57: #{encoder_text_forward.1} parent=51 // pred_check
          %p604 = pneg %p221
        $region58: #{encoder_text_forward.1} parent=51 // pred_check_branch
          %606 = sbr.rel (%p604) target = $region60
        $region59: #{encoder_text_forward.1} parent=51 // pred_region
          %p607 = scmp.lt.s32.totalorder %s28, 1
          %s608 = scalar_select %p607, %s28, 1
          %s609 = smul.addr %s608, 3
          %s610 = scalar_lea.vmem %s8, %s609
        $region60: #{encoder_text_forward.1} parent=51 // pred_fallthru
          _
        // Predicated region
        $region61: #{encoder_text_forward.1} parent=51 // pred_check
          %p611 = pneg %p247
        $region62: #{encoder_text_forward.1} parent=51 // pred_check_branch
          %613 = sbr.rel (%p611) target = $region64
        $region63: #{encoder_text_forward.1} parent=51 // pred_region
          %p614 = scmp.lt.s32.totalorder %s28, 1
          %s615 = scalar_select %p614, %s28, 1
          %s616 = smul.addr %s615, 16
          %s617 = smul.addr %s616, 4
          %s618 = scalar_lea.vmem %s9, %s617
        $region64: #{encoder_text_forward.1} parent=51 // pred_fallthru
          _
        // Predicated region
        $region65: #{encoder_text_forward.1} parent=51 // pred_check
          %p619 = pneg %p273
        $region66: #{encoder_text_forward.1} parent=51 // pred_check_branch
          %621 = sbr.rel (%p619) target = $region68
        $region67: #{encoder_text_forward.1} parent=51 // pred_region
          %p622 = scmp.lt.s32.totalorder %s28, 1
          %s623 = scalar_select %p622, %s28, 1
          %s624 = scalar_lea.vmem %s10, %s623
        $region68: #{encoder_text_forward.1} parent=51 // pred_fallthru
          _
        // Predicated region
        $region69: #{encoder_text_forward.1} parent=51 // pred_check
          %p625 = pneg %p299
        $region70: #{encoder_text_forward.1} parent=51 // pred_check_branch
          %627 = sbr.rel (%p625) target = $region72
        $region71: #{encoder_text_forward.1} parent=51 // pred_region
          %p628 = scmp.lt.s32.totalorder %s28, 1
          %s629 = scalar_select %p628, %s28, 1
          %s630 = scalar_lea.vmem %s11, %s629
        $region72: #{encoder_text_forward.1} parent=51 // pred_fallthru
          _
        // Predicated region
        $region73: #{encoder_text_forward.1} parent=51 // pred_check
          %p631 = pneg %p325
        $region74: #{encoder_text_forward.1} parent=51 // pred_check_branch
          %633 = sbr.rel (%p631) target = $region76
        $region75: #{encoder_text_forward.1} parent=51 // pred_region
          %p634 = scmp.lt.s32.totalorder %s28, 1
          %s635 = scalar_select %p634, %s28, 1
          %s636 = scalar_lea.vmem %s12, %s635
        $region76: #{encoder_text_forward.1} parent=51 // pred_fallthru
          _
        // Predicated region
        $region77: #{encoder_text_forward.1} parent=51 // pred_check
          %p637 = pneg %p351
        $region78: #{encoder_text_forward.1} parent=51 // pred_check_branch
          %639 = sbr.rel (%p637) target = $region80
        $region79: #{encoder_text_forward.1} parent=51 // pred_region
          %p640 = scmp.lt.s32.totalorder %s28, 1
          %s641 = scalar_select %p640, %s28, 1
          %s642 = smul.addr %s641, 32
          %s643 = smul.addr %s642, 4
          %s644 = scalar_lea.vmem %s13, %s643
        $region80: #{encoder_text_forward.1} parent=51 // pred_fallthru
          _
        // Predicated region
        $region81: #{encoder_text_forward.1} parent=51 // pred_check
          %p645 = pneg %p377
        $region82: #{encoder_text_forward.1} parent=51 // pred_check_branch
          %647 = sbr.rel (%p645) target = $region84
        $region83: #{encoder_text_forward.1} parent=51 // pred_region
          %p648 = scmp.lt.s32.totalorder %s28, 1
          %s649 = scalar_select %p648, %s28, 1
          %s650 = smul.addr %s649, 2
          %s651 = scalar_lea.vmem %s14, %s650
        $region84: #{encoder_text_forward.1} parent=51 // pred_fallthru
          _
        // Predicated region
        $region85: #{encoder_text_forward.1} parent=51 // pred_check
          %p652 = pneg %p403
        $region86: #{encoder_text_forward.1} parent=51 // pred_check_branch
          %654 = sbr.rel (%p652) target = $region88
        $region87: #{encoder_text_forward.1} parent=51 // pred_region
          %p655 = scmp.lt.s32.totalorder %s28, 1
          %s656 = scalar_select %p655, %s28, 1
          %s657 = smul.addr %s656, 32
          %s658 = smul.addr %s657, 4
          %s659 = scalar_lea.vmem %s15, %s658
        $region88: #{encoder_text_forward.1} parent=51 // pred_fallthru
          _
        // Predicated region
        $region89: #{encoder_text_forward.1} parent=51 // pred_check
          %p660 = pneg %p429
        $region90: #{encoder_text_forward.1} parent=51 // pred_check_branch
          %662 = sbr.rel (%p660) target = $region92
        $region91: #{encoder_text_forward.1} parent=51 // pred_region
          %p663 = scmp.lt.s32.totalorder %s28, 1
          %s664 = scalar_select %p663, %s28, 1
          %s665 = scalar_lea.vmem %s16, %s664
        $region92: #{encoder_text_forward.1} parent=51 // pred_fallthru
          _
        // Predicated region
        $region93: #{encoder_text_forward.1} parent=51 // pred_check
          %p666 = pneg %p455
        $region94: #{encoder_text_forward.1} parent=51 // pred_check_branch
          %668 = sbr.rel (%p666) target = $region96
        $region95: #{encoder_text_forward.1} parent=51 // pred_region
          %p669 = scmp.lt.s32.totalorder %s28, 1
          %s670 = scalar_select %p669, %s28, 1
          %s671 = scalar_lea.vmem %s17, %s670
        $region96: #{encoder_text_forward.1} parent=51 // pred_fallthru
          _
        // Predicated region
        $region97: #{encoder_text_forward.1} parent=51 // pred_check
          %p672 = pneg %p481
        $region98: #{encoder_text_forward.1} parent=51 // pred_check_branch
          %674 = sbr.rel (%p672) target = $region100
        $region99: #{encoder_text_forward.1} parent=51 // pred_region
          %p675 = scmp.lt.s32.totalorder %s28, 1
          %s676 = scalar_select %p675, %s28, 1
          %s677 = scalar_lea.vmem %s18, %s676
        $region100: #{encoder_text_forward.1} parent=51 // pred_fallthru
          _
      $region52: #{encoder_text_forward.1} parent=5 // pred_fallthru
        _
      %p678 = scmp.le.s32.totalorder 1, %s28
      %p679 = scmp.lt.s32.totalorder %s28, 3
      %p680 = pnand %p678, %p679
      %p681 = pneg %p680
      // Predicated region
      $region101: #{encoder_text_forward.1} parent=5 // pred_check
        _
      $region102: #{encoder_text_forward.1} parent=5 // pred_check_branch
        %683 = sbr.rel (%p680) target = $region104
      $region103: #{encoder_text_forward.1} parent=5 // pred_region
        %s684 = ssub.s32 %s28, 1
        %p685 = pneg %p49
        %p686 = pneg %p46
        %p687 = pneg %p70
        %p688 = pneg %p67
        %p689 = pneg %p91
        %p690 = pneg %p88
        %p691 = pneg %p112
        %p692 = pneg %p109
        %p693 = pneg %p133
        %p694 = pneg %p130
        %p695 = pneg %p154
        %p696 = pneg %p151
        %p697 = pneg %p175
        %p698 = pneg %p172
        %p699 = scmp.lt.s32.totalorder %s33, 1
        %s700 = scalar_select %p699, %s33, 1
        %s701 = smul.addr %s700, 48
        %s702 = smul.addr %s701, 4
        %s703 = scalar_lea.vmem %s7, %s702
        %p704 = pneg %p201
        %p705 = pneg %p198
        %p706 = scmp.lt.s32.totalorder %s33, 1
        %s707 = scalar_select %p706, %s33, 1
        %s708 = smul.addr %s707, 3
        %s709 = scalar_lea.vmem %s8, %s708
        %p710 = pneg %p227
        %p711 = pneg %p224
        %p712 = scmp.lt.s32.totalorder %s33, 1
        %s713 = scalar_select %p712, %s33, 1
        %s714 = smul.addr %s713, 16
        %s715 = smul.addr %s714, 4
        %s716 = scalar_lea.vmem %s9, %s715
        %p717 = pneg %p253
        %p718 = pneg %p250
        %p719 = scmp.lt.s32.totalorder %s33, 1
        %s720 = scalar_select %p719, %s33, 1
        %s721 = scalar_lea.vmem %s10, %s720
        %p722 = pneg %p279
        %p723 = pneg %p276
        %p724 = scmp.lt.s32.totalorder %s33, 1
        %s725 = scalar_select %p724, %s33, 1
        %s726 = scalar_lea.vmem %s11, %s725
        %p727 = pneg %p305
        %p728 = pneg %p302
        %p729 = scmp.lt.s32.totalorder %s33, 1
        %s730 = scalar_select %p729, %s33, 1
        %s731 = scalar_lea.vmem %s12, %s730
        %p732 = pneg %p331
        %p733 = pneg %p328
        %p734 = scmp.lt.s32.totalorder %s33, 1
        %s735 = scalar_select %p734, %s33, 1
        %s736 = smul.addr %s735, 32
        %s737 = smul.addr %s736, 4
        %s738 = scalar_lea.vmem %s13, %s737
        %p739 = pneg %p357
        %p740 = pneg %p354
        %p741 = scmp.lt.s32.totalorder %s33, 1
        %s742 = scalar_select %p741, %s33, 1
        %s743 = smul.addr %s742, 2
        %s744 = scalar_lea.vmem %s14, %s743
        %p745 = pneg %p383
        %p746 = pneg %p380
        %p747 = scmp.lt.s32.totalorder %s33, 1
        %s748 = scalar_select %p747, %s33, 1
        %s749 = smul.addr %s748, 32
        %s750 = smul.addr %s749, 4
        %s751 = scalar_lea.vmem %s15, %s750
        %p752 = pneg %p409
        %p753 = pneg %p406
        %p754 = scmp.lt.s32.totalorder %s33, 1
        %s755 = scalar_select %p754, %s33, 1
        %s756 = scalar_lea.vmem %s16, %s755
        %p757 = pneg %p435
        %p758 = pneg %p432
        %p759 = scmp.lt.s32.totalorder %s33, 1
        %s760 = scalar_select %p759, %s33, 1
        %s761 = scalar_lea.vmem %s17, %s760
        %p762 = pneg %p461
        %p763 = pneg %p458
        %p764 = scmp.lt.s32.totalorder %s33, 1
        %s765 = scalar_select %p764, %s33, 1
        %s766 = scalar_lea.vmem %s18, %s765
        %p767 = pneg %p487
        %p768 = pneg %p484
        %p769 = pneg %p508
        %p770 = pneg %p505
        %p771 = pneg %p529
        %p772 = pneg %p526
        %p773 = pneg %p550
        %p774 = pneg %p547
        %p775 = scmp.lt.s32.totalorder %s33, 1
        %s776 = scalar_select %p775, %s33, 1
        %s777 = smul.addr %s776, 48
        %s778 = smul.addr %s777, 4
        %s779 = scalar_lea.vmem %s7, %s778
        %p780 = scmp.lt.s32.totalorder %s33, 1
        %s781 = scalar_select %p780, %s33, 1
        %s782 = smul.addr %s781, 3
        %s783 = scalar_lea.vmem %s8, %s782
        %p784 = scmp.lt.s32.totalorder %s33, 1
        %s785 = scalar_select %p784, %s33, 1
        %s786 = smul.addr %s785, 16
        %s787 = smul.addr %s786, 4
        %s788 = scalar_lea.vmem %s9, %s787
        %p789 = scmp.lt.s32.totalorder %s33, 1
        %s790 = scalar_select %p789, %s33, 1
        %s791 = scalar_lea.vmem %s10, %s790
        %p792 = scmp.lt.s32.totalorder %s33, 1
        %s793 = scalar_select %p792, %s33, 1
        %s794 = scalar_lea.vmem %s11, %s793
        %p795 = scmp.lt.s32.totalorder %s33, 1
        %s796 = scalar_select %p795, %s33, 1
        %s797 = scalar_lea.vmem %s12, %s796
        %p798 = scmp.lt.s32.totalorder %s33, 1
        %s799 = scalar_select %p798, %s33, 1
        %s800 = smul.addr %s799, 32
        %s801 = smul.addr %s800, 4
        %s802 = scalar_lea.vmem %s13, %s801
        %p803 = scmp.lt.s32.totalorder %s33, 1
        %s804 = scalar_select %p803, %s33, 1
        %s805 = smul.addr %s804, 2
        %s806 = scalar_lea.vmem %s14, %s805
        %p807 = scmp.lt.s32.totalorder %s33, 1
        %s808 = scalar_select %p807, %s33, 1
        %s809 = smul.addr %s808, 32
        %s810 = smul.addr %s809, 4
        %s811 = scalar_lea.vmem %s15, %s810
        %p812 = scmp.lt.s32.totalorder %s33, 1
        %s813 = scalar_select %p812, %s33, 1
        %s814 = scalar_lea.vmem %s16, %s813
        %p815 = scmp.lt.s32.totalorder %s33, 1
        %s816 = scalar_select %p815, %s33, 1
        %s817 = scalar_lea.vmem %s17, %s816
        %p818 = scmp.lt.s32.totalorder %s33, 1
        %s819 = scalar_select %p818, %s33, 1
        %s820 = scalar_lea.vmem %s18, %s819
        %p822 = scmp.eq.s32.totalorder %s33, 0
        // Predicated region
        $region105: #{encoder_text_forward.1} parent=103 // pred_check
          %p823 = pneg %p822
        $region106: #{encoder_text_forward.1} parent=103 // pred_check_branch
          %825 = sbr.rel (%p823) target = $region108
        $region107: #{encoder_text_forward.1} parent=103 // pred_region
          %v826 = vld [vmem:[%s0] sm:$0xff]
          %v827 = vld [vmem:[%s0 + $0x8] sm:$0xff]
          %v828 = vld [vmem:[%s0 + $0x10] sm:$0xff]
          %v829 = vld [vmem:[%s0 + $0x18] sm:$0xff]
          %v830 = vld [vmem:[%s5] sm:$0x1]
          %v831 = vld [vmem:[%s6] sm:$0x1]
          %832 = vadd.xlane.f32.xlu0 %v826
          %v833 = vpop.xlane.xlu0 %832
          %834 = vadd.xlane.f32.xlu0 %v827
          %v835 = vpop.xlane.xlu0 %834
          %836 = vadd.xlane.f32.xlu0 %v828
          %v837 = vpop.xlane.xlu0 %836
          %838 = vadd.xlane.f32.xlu0 %v829
          %v839 = vpop.xlane.xlu0 %838
          %v840 = vrcp.pop 128.0
          %v841 = vmul.f32 %v833, %v840
          %v842 = vmul.f32 %v835, %v840
          %v843 = vmul.f32 %v837, %v840
          %v844 = vmul.f32 %v839, %v840
          %v845 = vsub.f32 %v826, %v841
          %v846 = vsub.f32 %v827, %v842
          %v847 = vsub.f32 %v828, %v843
          %v848 = vsub.f32 %v829, %v844
          %v849 = vmul.f32 %v845, %v845
          %v850 = vmul.f32 %v846, %v846
          %v851 = vmul.f32 %v847, %v847
          %v852 = vmul.f32 %v848, %v848
          %853 = vadd.xlane.f32.xlu0 %v849
          %v854 = vpop.xlane.xlu0 %853
          %855 = vadd.xlane.f32.xlu0 %v850
          %v856 = vpop.xlane.xlu0 %855
          %857 = vadd.xlane.f32.xlu0 %v851
          %v858 = vpop.xlane.xlu0 %857
          %859 = vadd.xlane.f32.xlu0 %v852
          %v860 = vpop.xlane.xlu0 %859
          %v861 = vmul.f32 %v854, %v840
          %v862 = vmul.f32 %v856, %v840
          %v863 = vmul.f32 %v858, %v840
          %v864 = vmul.f32 %v860, %v840
          %v865 = vadd.f32 %v861, 1e-12
          %v866 = vadd.f32 %v862, 1e-12
          %v867 = vadd.f32 %v863, 1e-12
          %v868 = vadd.f32 %v864, 1e-12
          %v869 = vrsqrt.pop %v865
          %v870 = vrsqrt.pop %v866
          %v871 = vrsqrt.pop %v867
          %v872 = vrsqrt.pop %v868
          %v873 = vmul.f32 %v845, %v869
          %v874 = vmul.f32 %v846, %v870
          %v875 = vmul.f32 %v847, %v871
          %v876 = vmul.f32 %v848, %v872
          %v878 = vlaneseq
          %v879 = vshrl.u32 %v878, 7
          %v880 = vsub.s32 0, %v879
          %v881 = vrot.slane %v830, %v880
          %v883 = vmul.f32 %v873, %v881
          %v884 = vmul.f32 %v874, %v881
          %v885 = vmul.f32 %v875, %v881
          %v886 = vmul.f32 %v876, %v881
          %v888 = vlaneseq
          %v889 = vshrl.u32 %v888, 7
          %v890 = vsub.s32 0, %v889
          %v891 = vrot.slane %v831, %v890
          %v893 = vadd.f32 %v883, %v891
          %v894 = vadd.f32 %v884, %v891
          %v895 = vadd.f32 %v885, %v891
          %v896 = vadd.f32 %v886, %v891
          %897 = vst [vmem:[#allocation2] sm:$0xff] %v893
          %898 = vst [vmem:[#allocation2 + $0x8] sm:$0xff] %v894
          %899 = vst [vmem:[#allocation2 + $0x10] sm:$0xff] %v895
          %900 = vst [vmem:[#allocation2 + $0x18] sm:$0xff] %v896
        $region108: #{encoder_text_forward.1} parent=103 // pred_fallthru
          _
        %v901 = vld [vmem:[#allocation2] sm:$0xff]
        %v902 = vld [vmem:[#allocation2 + $0x8] sm:$0xff]
        %v903 = vld [vmem:[#allocation2 + $0x10] sm:$0xff]
        %v904 = vld [vmem:[#allocation2 + $0x18] sm:$0xff]
        %v905 = vpack.c.bf16 %v902, %v901
        %v906 = vpack.c.bf16 %v904, %v903
        %v907 = vld [vmem:[%s779] sm:$0xff]
        %v908 = vld [vmem:[%s779 + $0x8] sm:$0xf]
        %v909 = vld [vmem:[%s779 + $0xc] sm:$0xff]
        %v910 = vld [vmem:[%s779 + $0x14] sm:$0xf]
        %v911 = vld [vmem:[%s779 + $0x18] sm:$0xff]
        %v912 = vld [vmem:[%s779 + $0x20] sm:$0xf]
        %v913 = vld [vmem:[%s779 + $0x24] sm:$0xff]
        %v914 = vld [vmem:[%s779 + $0x2c] sm:$0xf]
        %v915 = vld [vmem:[%s779 + $0x30] sm:$0xff]
        %v916 = vld [vmem:[%s779 + $0x38] sm:$0xf]
        %v917 = vld [vmem:[%s779 + $0x3c] sm:$0xff]
        %v918 = vld [vmem:[%s779 + $0x44] sm:$0xf]
        %v919 = vld [vmem:[%s779 + $0x48] sm:$0xff]
        %v920 = vld [vmem:[%s779 + $0x50] sm:$0xf]
        %v921 = vld [vmem:[%s779 + $0x54] sm:$0xff]
        %v922 = vld [vmem:[%s779 + $0x5c] sm:$0xf]
        %v923 = vld [vmem:[%s779 + $0x60] sm:$0xff]
        %v924 = vld [vmem:[%s779 + $0x68] sm:$0xf]
        %v925 = vld [vmem:[%s779 + $0x6c] sm:$0xff]
        %v926 = vld [vmem:[%s779 + $0x74] sm:$0xf]
        %v927 = vld [vmem:[%s779 + $0x78] sm:$0xff]
        %v928 = vld [vmem:[%s779 + $0x80] sm:$0xf]
        %v929 = vld [vmem:[%s779 + $0x84] sm:$0xff]
        %v930 = vld [vmem:[%s779 + $0x8c] sm:$0xf]
        %v931 = vld [vmem:[%s779 + $0x90] sm:$0xff]
        %v932 = vld [vmem:[%s779 + $0x98] sm:$0xf]
        %v933 = vld [vmem:[%s779 + $0x9c] sm:$0xff]
        %v934 = vld [vmem:[%s779 + $0xa4] sm:$0xf]
        %v935 = vld [vmem:[%s779 + $0xa8] sm:$0xff]
        %v936 = vld [vmem:[%s779 + $0xb0] sm:$0xf]
        %v937 = vld [vmem:[%s779 + $0xb4] sm:$0xff]
        %v938 = vld [vmem:[%s779 + $0xbc] sm:$0xf]
        %v939 = vld [vmem:[%s783] sm:$0x7]
        %v941 = vlaneseq
        %v942 = vshrl.u32 %v941, 7
        %v943 = vsub.s32 0, %v942
        %v944 = vrot.slane %v939, %v943
        %v945 = vlaneseq
        %v946 = vshrl.u32 %v945, 7
        %v947 = vsub.s32 1, %v946
        %v948 = vrot.slane %v939, %v947
        %v949 = vlaneseq
        %v950 = vshrl.u32 %v949, 7
        %v951 = vsub.s32 2, %v950
        %v952 = vrot.slane %v939, %v951
        %v988 = vunpack.c.l.b16 %v907
        %v989 = vunpack.c.h.b16 %v907
        %v990 = vunpack.c.l.b16 %v908
        %v991 = vunpack.c.l.b16 %v909
        %v992 = vunpack.c.h.b16 %v909
        %v993 = vunpack.c.l.b16 %v910
        %v994 = vunpack.c.l.b16 %v911
        %v995 = vunpack.c.h.b16 %v911
        %v996 = vunpack.c.l.b16 %v912
        %v997 = vunpack.c.l.b16 %v913
        %v998 = vunpack.c.h.b16 %v913
        %v999 = vunpack.c.l.b16 %v914
        %v1000 = vunpack.c.l.b16 %v915
        %v1001 = vunpack.c.h.b16 %v915
        %v1002 = vunpack.c.l.b16 %v916
        %v1003 = vunpack.c.l.b16 %v917
        %v1004 = vunpack.c.h.b16 %v917
        %v1005 = vunpack.c.l.b16 %v918
        %v1006 = vunpack.c.l.b16 %v919
        %v1007 = vunpack.c.h.b16 %v919
        %v1008 = vunpack.c.l.b16 %v920
        %v1009 = vunpack.c.l.b16 %v921
        %v1010 = vunpack.c.h.b16 %v921
        %v1011 = vunpack.c.l.b16 %v922
        %v1012 = vunpack.c.l.b16 %v923
        %v1013 = vunpack.c.h.b16 %v923
        %v1014 = vunpack.c.l.b16 %v924
        %v1015 = vunpack.c.l.b16 %v925
        %v1016 = vunpack.c.h.b16 %v925
        %v1017 = vunpack.c.l.b16 %v926
        %v1018 = vunpack.c.l.b16 %v927
        %v1019 = vunpack.c.h.b16 %v927
        %v1020 = vunpack.c.l.b16 %v928
        %v1021 = vunpack.c.l.b16 %v929
        %v1022 = vunpack.c.h.b16 %v929
        %v1023 = vunpack.c.l.b16 %v930
        %v1024 = vunpack.c.l.b16 %v931
        %v1025 = vunpack.c.h.b16 %v931
        %v1026 = vunpack.c.l.b16 %v932
        %v1027 = vunpack.c.l.b16 %v933
        %v1028 = vunpack.c.h.b16 %v933
        %v1029 = vunpack.c.l.b16 %v934
        %v1030 = vunpack.c.l.b16 %v935
        %v1031 = vunpack.c.h.b16 %v935
        %v1032 = vunpack.c.l.b16 %v936
        %v1033 = vunpack.c.l.b16 %v937
        %v1034 = vunpack.c.h.b16 %v937
        %v1035 = vunpack.c.l.b16 %v938
        %v1036 = vpack.c.b16 %v991, %v988
        %v1037 = vpack.c.b16 %v992, %v989
        %v1038 = vpack.c.b16 %v993, %v990
        %v1039 = vpack.c.b16 %v997, %v994
        %v1040 = vpack.c.b16 %v998, %v995
        %v1041 = vpack.c.b16 %v999, %v996
        %v1042 = vpack.c.b16 %v1003, %v1000
        %v1043 = vpack.c.b16 %v1004, %v1001
        %v1044 = vpack.c.b16 %v1005, %v1002
        %v1045 = vpack.c.b16 %v1009, %v1006
        %v1046 = vpack.c.b16 %v1010, %v1007
        %v1047 = vpack.c.b16 %v1011, %v1008
        %v1048 = vpack.c.b16 %v1015, %v1012
        %v1049 = vpack.c.b16 %v1016, %v1013
        %v1050 = vpack.c.b16 %v1017, %v1014
        %v1051 = vpack.c.b16 %v1021, %v1018
        %v1052 = vpack.c.b16 %v1022, %v1019
        %v1053 = vpack.c.b16 %v1023, %v1020
        %v1054 = vpack.c.b16 %v1027, %v1024
        %v1055 = vpack.c.b16 %v1028, %v1025
        %v1056 = vpack.c.b16 %v1029, %v1026
        %v1057 = vpack.c.b16 %v1033, %v1030
        %v1058 = vpack.c.b16 %v1034, %v1031
        %v1059 = vpack.c.b16 %v1035, %v1032
        %1084 = vmatprep.subr.bf16.mxu0 %v1037
        %1085 = vmatpush1.bf16.msra.mxu0 %v1036
        %1086 = vmatprep.subr.bf16.mxu0 %v1040
        %1087 = vmatpush1.bf16.msra.mxu0 %v1039
        %1088 = vmatprep.subr.bf16.mxu0 %v1043
        %1089 = vmatpush1.bf16.msra.mxu0 %v1042
        %1090 = vmatprep.subr.bf16.mxu0 %v1046
        %1091 = vmatpush1.bf16.msra.mxu0 %v1045
        %1092 = vmatprep.subr.bf16.mxu0 %v1049
        %1093 = vmatpush1.bf16.msra.mxu0 %v1048
        %1094 = vmatprep.subr.bf16.mxu0 %v1052
        %1095 = vmatpush1.bf16.msra.mxu0 %v1051
        %1096 = vmatprep.subr.bf16.mxu0 %v1055
        %1097 = vmatpush1.bf16.msra.mxu0 %v1054
        %1098 = vmatprep.subr.bf16.mxu0 %v1058
        %1099 = vmatpush1.bf16.msra.mxu0 %v1057
        %1100 = vmatprep.subr.bf16.mxu0 0
        %1101 = vmatpush1.bf16.msra.mxu0 0
        %1102 = vmatprep.subr.bf16.mxu0 0
        %1103 = vmatpush1.bf16.msra.mxu0 0
        %1104 = vmatprep.subr.bf16.mxu0 0
        %1105 = vmatpush1.bf16.msra.mxu0 0
        %1106 = vmatprep.subr.bf16.mxu0 0
        %1107 = vmatpush1.bf16.msra.mxu0 0
        %1108 = vmatprep.subr.bf16.mxu0 0
        %1109 = vmatpush1.bf16.msra.mxu0 0
        %1110 = vmatprep.subr.bf16.mxu0 0
        %1111 = vmatpush1.bf16.msra.mxu0 0
        %1112 = vmatprep.subr.bf16.mxu0 0
        %1113 = vmatpush1.bf16.msra.mxu0 0
        %1114 = vmatprep.subr.bf16.mxu0 0
        %1115 = vmatpush1.bf16.msra.mxu0 0
        %1116 = vmatprep.mubr.bf16.mxu0 0
        %1117 = vmatmul.mubr.bf16.gmra.mrb[0].mxu0 %v905
        %v1118 = vpop.f32.mrb[0].mxu0
        %v1119 = vadd.f32 %v944, %v1118
        %v1120 = vpop.f32.mrb[0].mxu0
        %v1121 = vadd.f32 %v948, %v1120
        %v1122 = vpop.f32.mrb[0].mxu0
        %v1123 = vadd.f32 %v944, %v1122
        %v1124 = vpop.f32.mrb[0].mxu0
        %v1125 = vadd.f32 %v948, %v1124
        %1126 = vmatprep.mubr.bf16.mxu0 0
        %1127 = vmatmul.mubr.bf16.gmra.mrb[0].mxu0 %v906
        %v1128 = vpop.f32.mrb[0].mxu0
        %v1129 = vadd.f32 %v944, %v1128
        %v1130 = vpop.f32.mrb[0].mxu0
        %v1131 = vadd.f32 %v948, %v1130
        %v1132 = vpop.f32.mrb[0].mxu0
        %v1133 = vadd.f32 %v944, %v1132
        %v1134 = vpop.f32.mrb[0].mxu0
        %v1135 = vadd.f32 %v948, %v1134
        %1136 = vdwg.mxu0
        %1137 = vmatprep.subr.bf16.mxu0 0
        %1138 = vmatpush1.bf16.msra.mxu0 %v1038
        %1139 = vmatprep.subr.bf16.mxu0 0
        %1140 = vmatpush1.bf16.msra.mxu0 %v1041
        %1141 = vmatprep.subr.bf16.mxu0 0
        %1142 = vmatpush1.bf16.msra.mxu0 %v1044
        %1143 = vmatprep.subr.bf16.mxu0 0
        %1144 = vmatpush1.bf16.msra.mxu0 %v1047
        %1145 = vmatprep.subr.bf16.mxu0 0
        %1146 = vmatpush1.bf16.msra.mxu0 %v1050
        %1147 = vmatprep.subr.bf16.mxu0 0
        %1148 = vmatpush1.bf16.msra.mxu0 %v1053
        %1149 = vmatprep.subr.bf16.mxu0 0
        %1150 = vmatpush1.bf16.msra.mxu0 %v1056
        %1151 = vmatprep.subr.bf16.mxu0 0
        %1152 = vmatpush1.bf16.msra.mxu0 %v1059
        %1153 = vmatprep.subr.bf16.mxu0 0
        %1154 = vmatpush1.bf16.msra.mxu0 0
        %1155 = vmatprep.subr.bf16.mxu0 0
        %1156 = vmatpush1.bf16.msra.mxu0 0
        %1157 = vmatprep.subr.bf16.mxu0 0
        %1158 = vmatpush1.bf16.msra.mxu0 0
        %1159 = vmatprep.subr.bf16.mxu0 0
        %1160 = vmatpush1.bf16.msra.mxu0 0
        %1161 = vmatprep.subr.bf16.mxu0 0
        %1162 = vmatpush1.bf16.msra.mxu0 0
        %1163 = vmatprep.subr.bf16.mxu0 0
        %1164 = vmatpush1.bf16.msra.mxu0 0
        %1165 = vmatprep.subr.bf16.mxu0 0
        %1166 = vmatpush1.bf16.msra.mxu0 0
        %1167 = vmatprep.subr.bf16.mxu0 0
        %1168 = vmatpush1.bf16.msra.mxu0 0
        %1169 = vmatprep.mubr.bf16.mxu0 0
        %1170 = vmatmul.mubr.bf16.gmra.mrb[0].mxu0 %v905
        %v1171 = vpop.f32.mrb[0].mxu0
        %v1172 = vadd.f32 %v952, %v1171
        %v1173 = vpop.f32.mrb[0].mxu0
        %v1174 = vpop.f32.mrb[0].mxu0
        %v1175 = vadd.f32 %v952, %v1174
        %v1176 = vpop.f32.mrb[0].mxu0
        %1177 = vmatprep.mubr.bf16.mxu0 0
        %1178 = vmatmul.mubr.bf16.gmra.mrb[0].mxu0 %v906
        %v1179 = vpop.f32.mrb[0].mxu0
        %v1180 = vadd.f32 %v952, %v1179
        %v1181 = vpop.f32.mrb[0].mxu0
        %v1182 = vpop.f32.mrb[0].mxu0
        %v1183 = vadd.f32 %v952, %v1182
        %v1184 = vpop.f32.mrb[0].mxu0
        %1185 = vdwg.mxu0
        %1186 = vxpose.xlu0.b32.start [1/16] %v1121, 128
        %1187 = vxpose.xlu0.b32.cont [2/16] %v1125, 128
        %1188 = vxpose.xlu0.b32.cont [3/16] %v1131, 128
        %1189 = vxpose.xlu0.b32.cont [4/16] %v1135, 128
        %1190 = vxpose.xlu0.b32.cont [5/16] 0.0, 128
        %1191 = vxpose.xlu0.b32.cont [6/16] 0.0, 128
        %1192 = vxpose.xlu0.b32.cont [7/16] 0.0, 128
        %1193 = vxpose.xlu0.b32.cont [8/16] 0.0, 128
        %1194 = vxpose.xlu0.b32.cont [9/16] 0.0, 128
        %1195 = vxpose.xlu0.b32.cont [10/16] 0.0, 128
        %1196 = vxpose.xlu0.b32.cont [11/16] 0.0, 128
        %1197 = vxpose.xlu0.b32.cont [12/16] 0.0, 128
        %1198 = vxpose.xlu0.b32.cont [13/16] 0.0, 128
        %1199 = vxpose.xlu0.b32.cont [14/16] 0.0, 128
        %1200 = vxpose.xlu0.b32.cont [15/16] 0.0, 128
        %1201 = vxpose.xlu0.b32.end [16/16] 0.0, 128
        %v1202 = vpop.trf.xlu0
        %v1203 = vpop.trf.xlu0
        %v1204 = vpop.trf.xlu0
        %v1205 = vpop.trf.xlu0
        %v1206 = vpop.trf.xlu0
        %v1207 = vpop.trf.xlu0
        %v1208 = vpop.trf.xlu0
        %v1209 = vpop.trf.xlu0
        %v1210 = vpop.trf.xlu0
        %v1211 = vpop.trf.xlu0
        %v1212 = vpop.trf.xlu0
        %v1213 = vpop.trf.xlu0
        %v1214 = vpop.trf.xlu0
        %v1215 = vpop.trf.xlu0
        %v1216 = vpop.trf.xlu0
        %v1217 = vpop.trf.xlu0
        %1234 = vrot.lane.b32.xlu0 %v1202, 32
        %v1235 = vpop.permute.xlu0 %1234
        %1236 = vrot.lane.b32.xlu0 %v1203, 32
        %v1237 = vpop.permute.xlu0 %1236
        %1238 = vrot.lane.b32.xlu0 %v1204, 32
        %v1239 = vpop.permute.xlu0 %1238
        %1240 = vrot.lane.b32.xlu0 %v1205, 32
        %v1241 = vpop.permute.xlu0 %1240
        %1242 = vrot.lane.b32.xlu0 %v1206, 32
        %v1243 = vpop.permute.xlu0 %1242
        %1244 = vrot.lane.b32.xlu0 %v1207, 32
        %v1245 = vpop.permute.xlu0 %1244
        %1246 = vrot.lane.b32.xlu0 %v1208, 32
        %v1247 = vpop.permute.xlu0 %1246
        %1248 = vrot.lane.b32.xlu0 %v1209, 32
        %v1249 = vpop.permute.xlu0 %1248
        %1250 = vrot.lane.b32.xlu0 %v1210, 32
        %v1251 = vpop.permute.xlu0 %1250
        %1252 = vrot.lane.b32.xlu0 %v1211, 32
        %v1253 = vpop.permute.xlu0 %1252
        %1254 = vrot.lane.b32.xlu0 %v1212, 32
        %v1255 = vpop.permute.xlu0 %1254
        %1256 = vrot.lane.b32.xlu0 %v1213, 32
        %v1257 = vpop.permute.xlu0 %1256
        %1258 = vrot.lane.b32.xlu0 %v1214, 32
        %v1259 = vpop.permute.xlu0 %1258
        %1260 = vrot.lane.b32.xlu0 %v1215, 32
        %v1261 = vpop.permute.xlu0 %1260
        %1262 = vrot.lane.b32.xlu0 %v1216, 32
        %v1263 = vpop.permute.xlu0 %1262
        %1264 = vrot.lane.b32.xlu0 %v1217, 32
        %v1265 = vpop.permute.xlu0 %1264
        %1282 = vrot.lane.b32.xlu0 %v1202, 64
        %v1283 = vpop.permute.xlu0 %1282
        %1284 = vrot.lane.b32.xlu0 %v1203, 64
        %v1285 = vpop.permute.xlu0 %1284
        %1286 = vrot.lane.b32.xlu0 %v1204, 64
        %v1287 = vpop.permute.xlu0 %1286
        %1288 = vrot.lane.b32.xlu0 %v1205, 64
        %v1289 = vpop.permute.xlu0 %1288
        %1290 = vrot.lane.b32.xlu0 %v1206, 64
        %v1291 = vpop.permute.xlu0 %1290
        %1292 = vrot.lane.b32.xlu0 %v1207, 64
        %v1293 = vpop.permute.xlu0 %1292
        %1294 = vrot.lane.b32.xlu0 %v1208, 64
        %v1295 = vpop.permute.xlu0 %1294
        %1296 = vrot.lane.b32.xlu0 %v1209, 64
        %v1297 = vpop.permute.xlu0 %1296
        %1298 = vrot.lane.b32.xlu0 %v1210, 64
        %v1299 = vpop.permute.xlu0 %1298
        %1300 = vrot.lane.b32.xlu0 %v1211, 64
        %v1301 = vpop.permute.xlu0 %1300
        %1302 = vrot.lane.b32.xlu0 %v1212, 64
        %v1303 = vpop.permute.xlu0 %1302
        %1304 = vrot.lane.b32.xlu0 %v1213, 64
        %v1305 = vpop.permute.xlu0 %1304
        %1306 = vrot.lane.b32.xlu0 %v1214, 64
        %v1307 = vpop.permute.xlu0 %1306
        %1308 = vrot.lane.b32.xlu0 %v1215, 64
        %v1309 = vpop.permute.xlu0 %1308
        %1310 = vrot.lane.b32.xlu0 %v1216, 64
        %v1311 = vpop.permute.xlu0 %1310
        %1312 = vrot.lane.b32.xlu0 %v1217, 64
        %v1313 = vpop.permute.xlu0 %1312
        %1330 = vrot.lane.b32.xlu0 %v1202, 96
        %v1331 = vpop.permute.xlu0 %1330
        %1332 = vrot.lane.b32.xlu0 %v1203, 96
        %v1333 = vpop.permute.xlu0 %1332
        %1334 = vrot.lane.b32.xlu0 %v1204, 96
        %v1335 = vpop.permute.xlu0 %1334
        %1336 = vrot.lane.b32.xlu0 %v1205, 96
        %v1337 = vpop.permute.xlu0 %1336
        %1338 = vrot.lane.b32.xlu0 %v1206, 96
        %v1339 = vpop.permute.xlu0 %1338
        %1340 = vrot.lane.b32.xlu0 %v1207, 96
        %v1341 = vpop.permute.xlu0 %1340
        %1342 = vrot.lane.b32.xlu0 %v1208, 96
        %v1343 = vpop.permute.xlu0 %1342
        %1344 = vrot.lane.b32.xlu0 %v1209, 96
        %v1345 = vpop.permute.xlu0 %1344
        %1346 = vrot.lane.b32.xlu0 %v1210, 96
        %v1347 = vpop.permute.xlu0 %1346
        %1348 = vrot.lane.b32.xlu0 %v1211, 96
        %v1349 = vpop.permute.xlu0 %1348
        %1350 = vrot.lane.b32.xlu0 %v1212, 96
        %v1351 = vpop.permute.xlu0 %1350
        %1352 = vrot.lane.b32.xlu0 %v1213, 96
        %v1353 = vpop.permute.xlu0 %1352
        %1354 = vrot.lane.b32.xlu0 %v1214, 96
        %v1355 = vpop.permute.xlu0 %1354
        %1356 = vrot.lane.b32.xlu0 %v1215, 96
        %v1357 = vpop.permute.xlu0 %1356
        %1358 = vrot.lane.b32.xlu0 %v1216, 96
        %v1359 = vpop.permute.xlu0 %1358
        %1360 = vrot.lane.b32.xlu0 %v1217, 96
        %v1361 = vpop.permute.xlu0 %1360
        %vm1378 = vcmask 261120
        %v1379 = vsel %vm1378, %v1202, %v1235
        %v1380 = vsel %vm1378, %v1203, %v1237
        %v1381 = vsel %vm1378, %v1204, %v1239
        %v1382 = vsel %vm1378, %v1205, %v1241
        %v1383 = vsel %vm1378, %v1206, %v1243
        %v1384 = vsel %vm1378, %v1207, %v1245
        %v1385 = vsel %vm1378, %v1208, %v1247
        %v1386 = vsel %vm1378, %v1209, %v1249
        %v1387 = vsel %vm1378, %v1210, %v1251
        %v1388 = vsel %vm1378, %v1211, %v1253
        %v1389 = vsel %vm1378, %v1212, %v1255
        %v1390 = vsel %vm1378, %v1213, %v1257
        %v1391 = vsel %vm1378, %v1214, %v1259
        %v1392 = vsel %vm1378, %v1215, %v1261
        %v1393 = vsel %vm1378, %v1216, %v1263
        %v1394 = vsel %vm1378, %v1217, %v1265
        %vm1395 = vcmask 523264
        %v1396 = vsel %vm1395, %v1379, %v1283
        %v1397 = vsel %vm1395, %v1380, %v1285
        %v1398 = vsel %vm1395, %v1381, %v1287
        %v1399 = vsel %vm1395, %v1382, %v1289
        %v1400 = vsel %vm1395, %v1383, %v1291
        %v1401 = vsel %vm1395, %v1384, %v1293
        %v1402 = vsel %vm1395, %v1385, %v1295
        %v1403 = vsel %vm1395, %v1386, %v1297
        %v1404 = vsel %vm1395, %v1387, %v1299
        %v1405 = vsel %vm1395, %v1388, %v1301
        %v1406 = vsel %vm1395, %v1389, %v1303
        %v1407 = vsel %vm1395, %v1390, %v1305
        %v1408 = vsel %vm1395, %v1391, %v1307
        %v1409 = vsel %vm1395, %v1392, %v1309
        %v1410 = vsel %vm1395, %v1393, %v1311
        %v1411 = vsel %vm1395, %v1394, %v1313
        %vm1412 = vcmask 785408
        %v1413 = vsel %vm1412, %v1396, %v1331
        %v1414 = vsel %vm1412, %v1397, %v1333
        %v1415 = vsel %vm1412, %v1398, %v1335
        %v1416 = vsel %vm1412, %v1399, %v1337
        %v1417 = vsel %vm1412, %v1400, %v1339
        %v1418 = vsel %vm1412, %v1401, %v1341
        %v1419 = vsel %vm1412, %v1402, %v1343
        %v1420 = vsel %vm1412, %v1403, %v1345
        %v1421 = vsel %vm1412, %v1404, %v1347
        %v1422 = vsel %vm1412, %v1405, %v1349
        %v1423 = vsel %vm1412, %v1406, %v1351
        %v1424 = vsel %vm1412, %v1407, %v1353
        %v1425 = vsel %vm1412, %v1408, %v1355
        %v1426 = vsel %vm1412, %v1409, %v1357
        %v1427 = vsel %vm1412, %v1410, %v1359
        %v1428 = vsel %vm1412, %v1411, %v1361
        %v1429 = vld [vmem:[%s2] sm:$0xff]
        %v1430 = vld [vmem:[%s2 + $0x8] sm:$0xff]
        %v1431 = vld [vmem:[%s2 + $0x10] sm:$0xff]
        %v1432 = vld [vmem:[%s2 + $0x18] sm:$0xff]
        %v1433 = vld [vmem:[%s2 + $0x20] sm:$0xff]
        %v1434 = vld [vmem:[%s2 + $0x28] sm:$0xff]
        %v1435 = vld [vmem:[%s2 + $0x30] sm:$0xff]
        %v1436 = vld [vmem:[%s2 + $0x38] sm:$0xff]
        %v1437 = vld [vmem:[%s2 + $0x40] sm:$0xff]
        %v1438 = vld [vmem:[%s2 + $0x48] sm:$0xff]
        %v1439 = vld [vmem:[%s2 + $0x50] sm:$0xff]
        %v1440 = vld [vmem:[%s2 + $0x58] sm:$0xff]
        %v1441 = vld [vmem:[%s2 + $0x60] sm:$0xff]
        %v1442 = vld [vmem:[%s2 + $0x68] sm:$0xff]
        %v1443 = vld [vmem:[%s2 + $0x70] sm:$0xff]
        %v1444 = vld [vmem:[%s2 + $0x78] sm:$0xff]
        %v1445 = vmul.f32 %v1413, %v1429
        %v1446 = vmul.f32 %v1414, %v1430
        %v1447 = vmul.f32 %v1415, %v1431
        %v1448 = vmul.f32 %v1416, %v1432
        %v1449 = vmul.f32 %v1417, %v1433
        %v1450 = vmul.f32 %v1418, %v1434
        %v1451 = vmul.f32 %v1419, %v1435
        %v1452 = vmul.f32 %v1420, %v1436
        %v1453 = vmul.f32 %v1421, %v1437
        %v1454 = vmul.f32 %v1422, %v1438
        %v1455 = vmul.f32 %v1423, %v1439
        %v1456 = vmul.f32 %v1424, %v1440
        %v1457 = vmul.f32 %v1425, %v1441
        %v1458 = vmul.f32 %v1426, %v1442
        %v1459 = vmul.f32 %v1427, %v1443
        %v1460 = vmul.f32 %v1428, %v1444
        %v1461 = vpack.c.bf16 %v1446, %v1445
        %v1462 = vpack.c.bf16 %v1448, %v1447
        %v1463 = vpack.c.bf16 %v1450, %v1449
        %v1464 = vpack.c.bf16 %v1452, %v1451
        %v1465 = vpack.c.bf16 %v1454, %v1453
        %v1466 = vpack.c.bf16 %v1456, %v1455
        %v1467 = vpack.c.bf16 %v1458, %v1457
        %v1468 = vpack.c.bf16 %v1460, %v1459
        %v1469 = vpack.c.bf16 %v1123, %v1119
        %v1470 = vpack.c.bf16 %v1133, %v1129
        %v1471 = vld [vmem:[%s1] sm:$0xff]
        %v1472 = vld [vmem:[%s1 + $0x8] sm:$0xff]
        %v1473 = vld [vmem:[%s1 + $0x10] sm:$0xff]
        %v1474 = vld [vmem:[%s1 + $0x18] sm:$0xff]
        %1475 = vmatprep.subr.bf16.mxu0 0
        %1476 = vmatpush1.bf16.msra.mxu0 %v1461
        %1477 = vmatprep.subr.bf16.mxu0 0
        %1478 = vmatpush1.bf16.msra.mxu0 %v1462
        %1479 = vmatprep.subr.bf16.mxu0 0
        %1480 = vmatpush1.bf16.msra.mxu0 %v1463
        %1481 = vmatprep.subr.bf16.mxu0 0
        %1482 = vmatpush1.bf16.msra.mxu0 %v1464
        %1483 = vmatprep.subr.bf16.mxu0 0
        %1484 = vmatpush1.bf16.msra.mxu0 %v1465
        %1485 = vmatprep.subr.bf16.mxu0 0
        %1486 = vmatpush1.bf16.msra.mxu0 %v1466
        %1487 = vmatprep.subr.bf16.mxu0 0
        %1488 = vmatpush1.bf16.msra.mxu0 %v1467
        %1489 = vmatprep.subr.bf16.mxu0 0
        %1490 = vmatpush1.bf16.msra.mxu0 %v1468
        %1491 = vmatprep.subr.bf16.mxu0 0
        %1492 = vmatpush1.bf16.msra.mxu0 0
        %1493 = vmatprep.subr.bf16.mxu0 0
        %1494 = vmatpush1.bf16.msra.mxu0 0
        %1495 = vmatprep.subr.bf16.mxu0 0
        %1496 = vmatpush1.bf16.msra.mxu0 0
        %1497 = vmatprep.subr.bf16.mxu0 0
        %1498 = vmatpush1.bf16.msra.mxu0 0
        %1499 = vmatprep.subr.bf16.mxu0 0
        %1500 = vmatpush1.bf16.msra.mxu0 0
        %1501 = vmatprep.subr.bf16.mxu0 0
        %1502 = vmatpush1.bf16.msra.mxu0 0
        %1503 = vmatprep.subr.bf16.mxu0 0
        %1504 = vmatpush1.bf16.msra.mxu0 0
        %1505 = vmatprep.subr.bf16.mxu0 0
        %1506 = vmatpush1.bf16.msra.mxu0 0
        %1507 = vmatprep.mubr.bf16.mxu0 0
        %1508 = vmatmul.mubr.bf16.gmra.mrb[0].mxu0 %v1469
        %v1509 = vpop.f32.mrb[0].mxu0
        %v1510 = vadd.f32 %v1471, %v1509
        %v1511 = vpop.f32.mrb[0].mxu0
        %v1512 = vpop.f32.mrb[0].mxu0
        %v1513 = vadd.f32 %v1472, %v1512
        %v1514 = vpop.f32.mrb[0].mxu0
        %1515 = vmatprep.mubr.bf16.mxu0 0
        %1516 = vmatmul.mubr.bf16.gmra.mrb[0].mxu0 %v1470
        %v1517 = vpop.f32.mrb[0].mxu0
        %v1518 = vadd.f32 %v1473, %v1517
        %v1519 = vpop.f32.mrb[0].mxu0
        %v1520 = vpop.f32.mrb[0].mxu0
        %v1521 = vadd.f32 %v1474, %v1520
        %v1522 = vpop.f32.mrb[0].mxu0
        %1523 = vdwg.mxu0
        %1524 = vmax.xlane.f32.xlu0 %v1510
        %v1525 = vpop.xlane.xlu0 %1524
        %1526 = vmax.xlane.f32.xlu0 %v1513
        %v1527 = vpop.xlane.xlu0 %1526
        %1528 = vmax.xlane.f32.xlu0 %v1518
        %v1529 = vpop.xlane.xlu0 %1528
        %1530 = vmax.xlane.f32.xlu0 %v1521
        %v1531 = vpop.xlane.xlu0 %1530
        %v1532 = vsub.f32 %v1510, %v1525
        %v1533 = vsub.f32 %v1513, %v1527
        %v1534 = vsub.f32 %v1518, %v1529
        %v1535 = vsub.f32 %v1521, %v1531
        %v1536 = vmul.f32 %v1532, 1.442695
        %v1537 = vpow.pop %v1536
        %v1538 = vmul.f32 %v1533, 1.442695
        %v1539 = vpow.pop %v1538
        %v1540 = vmul.f32 %v1534, 1.442695
        %v1541 = vpow.pop %v1540
        %v1542 = vmul.f32 %v1535, 1.442695
        %v1543 = vpow.pop %v1542
        %v1544 = vld [vmem:[%s4] sm:$0xff]
        %v1545 = vld [vmem:[%s4 + $0x8] sm:$0xff]
        %v1546 = vld [vmem:[%s4 + $0x10] sm:$0xff]
        %v1547 = vld [vmem:[%s4 + $0x18] sm:$0xff]
        %v1548 = vld [vmem:[%s4 + $0x20] sm:$0xff]
        %v1549 = vld [vmem:[%s4 + $0x28] sm:$0xff]
        %v1550 = vld [vmem:[%s4 + $0x30] sm:$0xff]
        %v1551 = vld [vmem:[%s4 + $0x38] sm:$0xff]
        %v1552 = vld [vmem:[%s4 + $0x40] sm:$0xff]
        %v1553 = vld [vmem:[%s4 + $0x48] sm:$0xff]
        %v1554 = vld [vmem:[%s4 + $0x50] sm:$0xff]
        %v1555 = vld [vmem:[%s4 + $0x58] sm:$0xff]
        %v1556 = vld [vmem:[%s4 + $0x60] sm:$0xff]
        %v1557 = vld [vmem:[%s4 + $0x68] sm:$0xff]
        %v1558 = vld [vmem:[%s4 + $0x70] sm:$0xff]
        %v1559 = vld [vmem:[%s4 + $0x78] sm:$0xff]
        %1560 = vmatprep.subr.mxu0 0.0
        %1561 = vmatpush1.msra.mxu0 %v1544
        %1562 = vmatprep.subr.mxu0 0.0
        %1563 = vmatpush1.msra.mxu0 %v1545
        %1564 = vmatprep.subr.mxu0 0.0
        %1565 = vmatpush1.msra.mxu0 %v1546
        %1566 = vmatprep.subr.mxu0 0.0
        %1567 = vmatpush1.msra.mxu0 %v1547
        %1568 = vmatprep.subr.mxu0 0.0
        %1569 = vmatpush1.msra.mxu0 %v1548
        %1570 = vmatprep.subr.mxu0 0.0
        %1571 = vmatpush1.msra.mxu0 %v1549
        %1572 = vmatprep.subr.mxu0 0.0
        %1573 = vmatpush1.msra.mxu0 %v1550
        %1574 = vmatprep.subr.mxu0 0.0
        %1575 = vmatpush1.msra.mxu0 %v1551
        %1576 = vmatprep.subr.mxu0 0.0
        %1577 = vmatpush1.msra.mxu0 %v1552
        %1578 = vmatprep.subr.mxu0 0.0
        %1579 = vmatpush1.msra.mxu0 %v1553
        %1580 = vmatprep.subr.mxu0 0.0
        %1581 = vmatpush1.msra.mxu0 %v1554
        %1582 = vmatprep.subr.mxu0 0.0
        %1583 = vmatpush1.msra.mxu0 %v1555
        %1584 = vmatprep.subr.mxu0 0.0
        %1585 = vmatpush1.msra.mxu0 %v1556
        %1586 = vmatprep.subr.mxu0 0.0
        %1587 = vmatpush1.msra.mxu0 %v1557
        %1588 = vmatprep.subr.mxu0 0.0
        %1589 = vmatpush1.msra.mxu0 %v1558
        %1590 = vmatprep.subr.mxu0 0.0
        %1591 = vmatpush1.msra.mxu0 %v1559
        %1592 = vmatprep.subr.mxu0 0.0
        %1593 = vmatpush1.msra.mxu0 0.0
        %1594 = vmatprep.subr.mxu0 0.0
        %1595 = vmatpush1.msra.mxu0 0.0
        %1596 = vmatprep.subr.mxu0 0.0
        %1597 = vmatpush1.msra.mxu0 0.0
        %1598 = vmatprep.subr.mxu0 0.0
        %1599 = vmatpush1.msra.mxu0 0.0
        %1600 = vmatprep.subr.mxu0 0.0
        %1601 = vmatpush1.msra.mxu0 0.0
        %1602 = vmatprep.subr.mxu0 0.0
        %1603 = vmatpush1.msra.mxu0 0.0
        %1604 = vmatprep.subr.mxu0 0.0
        %1605 = vmatpush1.msra.mxu0 0.0
        %1606 = vmatprep.subr.mxu0 0.0
        %1607 = vmatpush1.msra.mxu0 0.0
        %1608 = vmatprep.subr.mxu0 0.0
        %1609 = vmatpush1.msra.mxu0 0.0
        %1610 = vmatprep.subr.mxu0 0.0
        %1611 = vmatpush1.msra.mxu0 0.0
        %1612 = vmatprep.subr.mxu0 0.0
        %1613 = vmatpush1.msra.mxu0 0.0
        %1614 = vmatprep.subr.mxu0 0.0
        %1615 = vmatpush1.msra.mxu0 0.0
        %1616 = vmatprep.subr.mxu0 0.0
        %1617 = vmatpush1.msra.mxu0 0.0
        %1618 = vmatprep.subr.mxu0 0.0
        %1619 = vmatpush1.msra.mxu0 0.0
        %1620 = vmatprep.subr.mxu0 0.0
        %1621 = vmatpush1.msra.mxu0 0.0
        %1622 = vmatprep.subr.mxu0 0.0
        %1623 = vmatpush1.msra.mxu0 0.0
        %1624 = vmatprep.mubr.f32.mxu0 0.0
        %1625 = vmatmul.mubr.f32.gmra.mrb[0].mxu0 %v1537
        %v1626 = vpop.f32.mrb[0].mxu0
        %v1627 = vadd.f32 0.0, %v1626
        %v1628 = vpop.f32.mrb[0].mxu0
        %1629 = vmatprep.mubr.f32.mxu0 0.0
        %1630 = vmatmul.mubr.f32.gmra.mrb[0].mxu0 %v1539
        %v1631 = vpop.f32.mrb[0].mxu0
        %v1632 = vadd.f32 0.0, %v1631
        %v1633 = vpop.f32.mrb[0].mxu0
        %1634 = vmatprep.mubr.f32.mxu0 0.0
        %1635 = vmatmul.mubr.f32.gmra.mrb[0].mxu0 %v1541
        %v1636 = vpop.f32.mrb[0].mxu0
        %v1637 = vadd.f32 0.0, %v1636
        %v1638 = vpop.f32.mrb[0].mxu0
        %1639 = vmatprep.mubr.f32.mxu0 0.0
        %1640 = vmatmul.mubr.f32.gmra.mrb[0].mxu0 %v1543
        %v1641 = vpop.f32.mrb[0].mxu0
        %v1642 = vadd.f32 0.0, %v1641
        %v1643 = vpop.f32.mrb[0].mxu0
        %1644 = vdwg.mxu0
        %v1645 = vrcp.pop %v1627
        %v1646 = vrcp.pop %v1632
        %v1647 = vrcp.pop %v1637
        %v1648 = vrcp.pop %v1642
        %v1649 = vmul.f32 %v1537, %v1645
        %v1650 = vmul.f32 %v1539, %v1646
        %v1651 = vmul.f32 %v1541, %v1647
        %v1652 = vmul.f32 %v1543, %v1648
        %v1653 = vld [vmem:[%s3] sm:$0xff]
        %v1654 = vld [vmem:[%s3 + $0x8] sm:$0xff]
        %v1655 = vld [vmem:[%s3 + $0x10] sm:$0xff]
        %v1656 = vld [vmem:[%s3 + $0x18] sm:$0xff]
        %v1657 = vld [vmem:[%s3 + $0x20] sm:$0xff]
        %v1658 = vld [vmem:[%s3 + $0x28] sm:$0xff]
        %v1659 = vld [vmem:[%s3 + $0x30] sm:$0xff]
        %v1660 = vld [vmem:[%s3 + $0x38] sm:$0xff]
        %v1661 = vld [vmem:[%s3 + $0x40] sm:$0xff]
        %v1662 = vld [vmem:[%s3 + $0x48] sm:$0xff]
        %v1663 = vld [vmem:[%s3 + $0x50] sm:$0xff]
        %v1664 = vld [vmem:[%s3 + $0x58] sm:$0xff]
        %v1665 = vld [vmem:[%s3 + $0x60] sm:$0xff]
        %v1666 = vld [vmem:[%s3 + $0x68] sm:$0xff]
        %v1667 = vld [vmem:[%s3 + $0x70] sm:$0xff]
        %v1668 = vld [vmem:[%s3 + $0x78] sm:$0xff]
        %v1669 = vmul.f32 %v1172, %v1653
        %v1670 = vmul.f32 %v1175, %v1654
        %v1671 = vmul.f32 %v1180, %v1655
        %v1672 = vmul.f32 %v1183, %v1656
        %v1673 = vmul.f32 %v1172, %v1657
        %v1674 = vmul.f32 %v1175, %v1658
        %v1675 = vmul.f32 %v1180, %v1659
        %v1676 = vmul.f32 %v1183, %v1660
        %v1677 = vmul.f32 %v1172, %v1661
        %v1678 = vmul.f32 %v1175, %v1662
        %v1679 = vmul.f32 %v1180, %v1663
        %v1680 = vmul.f32 %v1183, %v1664
        %v1681 = vmul.f32 %v1172, %v1665
        %v1682 = vmul.f32 %v1175, %v1666
        %v1683 = vmul.f32 %v1180, %v1667
        %v1684 = vmul.f32 %v1183, %v1668
        %v1685 = vpack.c.bf16 %v1670, %v1669
        %v1686 = vpack.c.bf16 %v1672, %v1671
        %v1687 = vpack.c.bf16 %v1674, %v1673
        %v1688 = vpack.c.bf16 %v1676, %v1675
        %v1689 = vpack.c.bf16 %v1678, %v1677
        %v1690 = vpack.c.bf16 %v1680, %v1679
        %v1691 = vpack.c.bf16 %v1682, %v1681
        %v1692 = vpack.c.bf16 %v1684, %v1683
        %v1693 = vpack.c.bf16 %v1650, %v1649
        %v1694 = vpack.c.bf16 %v1652, %v1651
        %1695 = vmatprep.subr.bf16.mxu0 0
        %1696 = vmatpush1.bf16.msra.mxu0 %v1685
        %1697 = vmatprep.subr.bf16.mxu0 0
        %1698 = vmatpush1.bf16.msra.mxu0 %v1686
        %1699 = vmatprep.subr.bf16.mxu0 0
        %1700 = vmatpush1.bf16.msra.mxu0 %v1687
        %1701 = vmatprep.subr.bf16.mxu0 0
        %1702 = vmatpush1.bf16.msra.mxu0 %v1688
        %1703 = vmatprep.subr.bf16.mxu0 0
        %1704 = vmatpush1.bf16.msra.mxu0 %v1689
        %1705 = vmatprep.subr.bf16.mxu0 0
        %1706 = vmatpush1.bf16.msra.mxu0 %v1690
        %1707 = vmatprep.subr.bf16.mxu0 0
        %1708 = vmatpush1.bf16.msra.mxu0 %v1691
        %1709 = vmatprep.subr.bf16.mxu0 0
        %1710 = vmatpush1.bf16.msra.mxu0 %v1692
        %1711 = vmatprep.subr.bf16.mxu0 0
        %1712 = vmatpush1.bf16.msra.mxu0 0
        %1713 = vmatprep.subr.bf16.mxu0 0
        %1714 = vmatpush1.bf16.msra.mxu0 0
        %1715 = vmatprep.subr.bf16.mxu0 0
        %1716 = vmatpush1.bf16.msra.mxu0 0
        %1717 = vmatprep.subr.bf16.mxu0 0
        %1718 = vmatpush1.bf16.msra.mxu0 0
        %1719 = vmatprep.subr.bf16.mxu0 0
        %1720 = vmatpush1.bf16.msra.mxu0 0
        %1721 = vmatprep.subr.bf16.mxu0 0
        %1722 = vmatpush1.bf16.msra.mxu0 0
        %1723 = vmatprep.subr.bf16.mxu0 0
        %1724 = vmatpush1.bf16.msra.mxu0 0
        %1725 = vmatprep.subr.bf16.mxu0 0
        %1726 = vmatpush1.bf16.msra.mxu0 0
        %1727 = vmatprep.mubr.bf16.mxu0 0
        %1728 = vmatmul.mubr.bf16.gmra.mrb[0].mxu0 %v1693
        %v1729 = vpop.f32.mrb[0].mxu0
        %v1730 = vadd.f32 0.0, %v1729
        %v1731 = vpop.f32.mrb[0].mxu0
        %v1732 = vpop.f32.mrb[0].mxu0
        %v1733 = vadd.f32 0.0, %v1732
        %v1734 = vpop.f32.mrb[0].mxu0
        %1735 = vmatprep.mubr.bf16.mxu0 0
        %1736 = vmatmul.mubr.bf16.gmra.mrb[0].mxu0 %v1694
        %v1737 = vpop.f32.mrb[0].mxu0
        %v1738 = vadd.f32 0.0, %v1737
        %v1739 = vpop.f32.mrb[0].mxu0
        %v1740 = vpop.f32.mrb[0].mxu0
        %v1741 = vadd.f32 0.0, %v1740
        %v1742 = vpop.f32.mrb[0].mxu0
        %1743 = vdwg.mxu0
        %v1744 = vpack.c.bf16 %v1733, %v1730
        %v1745 = vpack.c.bf16 %v1741, %v1738
        %v1746 = vld [vmem:[%s788] sm:$0xf]
        %v1747 = vld [vmem:[%s788 + $0x4] sm:$0xf]
        %v1748 = vld [vmem:[%s788 + $0x8] sm:$0xf]
        %v1749 = vld [vmem:[%s788 + $0xc] sm:$0xf]
        %v1750 = vld [vmem:[%s788 + $0x10] sm:$0xf]
        %v1751 = vld [vmem:[%s788 + $0x14] sm:$0xf]
        %v1752 = vld [vmem:[%s788 + $0x18] sm:$0xf]
        %v1753 = vld [vmem:[%s788 + $0x1c] sm:$0xf]
        %v1754 = vld [vmem:[%s788 + $0x20] sm:$0xf]
        %v1755 = vld [vmem:[%s788 + $0x24] sm:$0xf]
        %v1756 = vld [vmem:[%s788 + $0x28] sm:$0xf]
        %v1757 = vld [vmem:[%s788 + $0x2c] sm:$0xf]
        %v1758 = vld [vmem:[%s788 + $0x30] sm:$0xf]
        %v1759 = vld [vmem:[%s788 + $0x34] sm:$0xf]
        %v1760 = vld [vmem:[%s788 + $0x38] sm:$0xf]
        %v1761 = vld [vmem:[%s788 + $0x3c] sm:$0xf]
        %v1762 = vld [vmem:[%s791] sm:$0x1]
        %v1764 = vlaneseq
        %v1765 = vshrl.u32 %v1764, 7
        %v1766 = vsub.s32 0, %v1765
        %v1767 = vrot.slane %v1762, %v1766
        %v1785 = vunpack.c.l.b16 %v1746
        %v1786 = vunpack.c.l.b16 %v1747
        %v1787 = vunpack.c.l.b16 %v1748
        %v1788 = vunpack.c.l.b16 %v1749
        %v1789 = vunpack.c.l.b16 %v1750
        %v1790 = vunpack.c.l.b16 %v1751
        %v1791 = vunpack.c.l.b16 %v1752
        %v1792 = vunpack.c.l.b16 %v1753
        %v1793 = vunpack.c.l.b16 %v1754
        %v1794 = vunpack.c.l.b16 %v1755
        %v1795 = vunpack.c.l.b16 %v1756
        %v1796 = vunpack.c.l.b16 %v1757
        %v1797 = vunpack.c.l.b16 %v1758
        %v1798 = vunpack.c.l.b16 %v1759
        %v1799 = vunpack.c.l.b16 %v1760
        %v1800 = vunpack.c.l.b16 %v1761
        %v1801 = vpack.c.b16 %v1786, %v1785
        %v1802 = vpack.c.b16 %v1788, %v1787
        %v1803 = vpack.c.b16 %v1790, %v1789
        %v1804 = vpack.c.b16 %v1792, %v1791
        %v1805 = vpack.c.b16 %v1794, %v1793
        %v1806 = vpack.c.b16 %v1796, %v1795
        %v1807 = vpack.c.b16 %v1798, %v1797
        %v1808 = vpack.c.b16 %v1800, %v1799
        %1817 = vmatprep.subr.bf16.mxu0 0
        %1818 = vmatpush1.bf16.msra.mxu0 %v1801
        %1819 = vmatprep.subr.bf16.mxu0 0
        %1820 = vmatpush1.bf16.msra.mxu0 %v1802
        %1821 = vmatprep.subr.bf16.mxu0 0
        %1822 = vmatpush1.bf16.msra.mxu0 %v1803
        %1823 = vmatprep.subr.bf16.mxu0 0
        %1824 = vmatpush1.bf16.msra.mxu0 %v1804
        %1825 = vmatprep.subr.bf16.mxu0 0
        %1826 = vmatpush1.bf16.msra.mxu0 %v1805
        %1827 = vmatprep.subr.bf16.mxu0 0
        %1828 = vmatpush1.bf16.msra.mxu0 %v1806
        %1829 = vmatprep.subr.bf16.mxu0 0
        %1830 = vmatpush1.bf16.msra.mxu0 %v1807
        %1831 = vmatprep.subr.bf16.mxu0 0
        %1832 = vmatpush1.bf16.msra.mxu0 %v1808
        %1833 = vmatprep.subr.bf16.mxu0 0
        %1834 = vmatpush1.bf16.msra.mxu0 0
        %1835 = vmatprep.subr.bf16.mxu0 0
        %1836 = vmatpush1.bf16.msra.mxu0 0
        %1837 = vmatprep.subr.bf16.mxu0 0
        %1838 = vmatpush1.bf16.msra.mxu0 0
        %1839 = vmatprep.subr.bf16.mxu0 0
        %1840 = vmatpush1.bf16.msra.mxu0 0
        %1841 = vmatprep.subr.bf16.mxu0 0
        %1842 = vmatpush1.bf16.msra.mxu0 0
        %1843 = vmatprep.subr.bf16.mxu0 0
        %1844 = vmatpush1.bf16.msra.mxu0 0
        %1845 = vmatprep.subr.bf16.mxu0 0
        %1846 = vmatpush1.bf16.msra.mxu0 0
        %1847 = vmatprep.subr.bf16.mxu0 0
        %1848 = vmatpush1.bf16.msra.mxu0 0
        %1849 = vmatprep.mubr.bf16.mxu0 0
        %1850 = vmatmul.mubr.bf16.gmra.mrb[0].mxu0 %v1744
        %v1851 = vpop.f32.mrb[0].mxu0
        %v1852 = vadd.f32 %v1767, %v1851
        %v1853 = vpop.f32.mrb[0].mxu0
        %v1854 = vpop.f32.mrb[0].mxu0
        %v1855 = vadd.f32 %v1767, %v1854
        %v1856 = vpop.f32.mrb[0].mxu0
        %1857 = vmatprep.mubr.bf16.mxu0 0
        %1858 = vmatmul.mubr.bf16.gmra.mrb[0].mxu0 %v1745
        %v1859 = vpop.f32.mrb[0].mxu0
        %v1860 = vadd.f32 %v1767, %v1859
        %v1861 = vpop.f32.mrb[0].mxu0
        %v1862 = vpop.f32.mrb[0].mxu0
        %v1863 = vadd.f32 %v1767, %v1862
        %v1864 = vpop.f32.mrb[0].mxu0
        %1865 = vdwg.mxu0
        %v1866 = vadd.f32 %v901, %v1852
        %v1867 = vadd.f32 %v902, %v1855
        %v1868 = vadd.f32 %v903, %v1860
        %v1869 = vadd.f32 %v904, %v1863
        %v1870 = vld [vmem:[%s794] sm:$0x1]
        %v1871 = vld [vmem:[%s797] sm:$0x1]
        %1872 = vadd.xlane.f32.xlu0 %v1866
        %v1873 = vpop.xlane.xlu0 %1872
        %1874 = vadd.xlane.f32.xlu0 %v1867
        %v1875 = vpop.xlane.xlu0 %1874
        %1876 = vadd.xlane.f32.xlu0 %v1868
        %v1877 = vpop.xlane.xlu0 %1876
        %1878 = vadd.xlane.f32.xlu0 %v1869
        %v1879 = vpop.xlane.xlu0 %1878
        %v1880 = vrcp.pop 128.0
        %v1881 = vmul.f32 %v1873, %v1880
        %v1882 = vmul.f32 %v1875, %v1880
        %v1883 = vmul.f32 %v1877, %v1880
        %v1884 = vmul.f32 %v1879, %v1880
        %v1885 = vsub.f32 %v1866, %v1881
        %v1886 = vsub.f32 %v1867, %v1882
        %v1887 = vsub.f32 %v1868, %v1883
        %v1888 = vsub.f32 %v1869, %v1884
        %v1889 = vmul.f32 %v1885, %v1885
        %v1890 = vmul.f32 %v1886, %v1886
        %v1891 = vmul.f32 %v1887, %v1887
        %v1892 = vmul.f32 %v1888, %v1888
        %1893 = vadd.xlane.f32.xlu0 %v1889
        %v1894 = vpop.xlane.xlu0 %1893
        %1895 = vadd.xlane.f32.xlu0 %v1890
        %v1896 = vpop.xlane.xlu0 %1895
        %1897 = vadd.xlane.f32.xlu0 %v1891
        %v1898 = vpop.xlane.xlu0 %1897
        %1899 = vadd.xlane.f32.xlu0 %v1892
        %v1900 = vpop.xlane.xlu0 %1899
        %v1901 = vmul.f32 %v1894, %v1880
        %v1902 = vmul.f32 %v1896, %v1880
        %v1903 = vmul.f32 %v1898, %v1880
        %v1904 = vmul.f32 %v1900, %v1880
        %v1905 = vadd.f32 %v1901, 1e-12
        %v1906 = vadd.f32 %v1902, 1e-12
        %v1907 = vadd.f32 %v1903, 1e-12
        %v1908 = vadd.f32 %v1904, 1e-12
        %v1909 = vrsqrt.pop %v1905
        %v1910 = vrsqrt.pop %v1906
        %v1911 = vrsqrt.pop %v1907
        %v1912 = vrsqrt.pop %v1908
        %v1913 = vmul.f32 %v1885, %v1909
        %v1914 = vmul.f32 %v1886, %v1910
        %v1915 = vmul.f32 %v1887, %v1911
        %v1916 = vmul.f32 %v1888, %v1912
        %v1918 = vlaneseq
        %v1919 = vshrl.u32 %v1918, 7
        %v1920 = vsub.s32 0, %v1919
        %v1921 = vrot.slane %v1870, %v1920
        %v1923 = vmul.f32 %v1913, %v1921
        %v1924 = vmul.f32 %v1914, %v1921
        %v1925 = vmul.f32 %v1915, %v1921
        %v1926 = vmul.f32 %v1916, %v1921
        %v1928 = vlaneseq
        %v1929 = vshrl.u32 %v1928, 7
        %v1930 = vsub.s32 0, %v1929
        %v1931 = vrot.slane %v1871, %v1930
        %v1933 = vadd.f32 %v1923, %v1931
        %v1934 = vadd.f32 %v1924, %v1931
        %v1935 = vadd.f32 %v1925, %v1931
        %v1936 = vadd.f32 %v1926, %v1931
        %v1937 = vpack.c.bf16 %v1934, %v1933
        %v1938 = vpack.c.bf16 %v1936, %v1935
        %v1939 = vld [vmem:[%s802] sm:$0xff]
        %v1940 = vld [vmem:[%s802 + $0x8] sm:$0xff]
        %v1941 = vld [vmem:[%s802 + $0x10] sm:$0xff]
        %v1942 = vld [vmem:[%s802 + $0x18] sm:$0xff]
        %v1943 = vld [vmem:[%s802 + $0x20] sm:$0xff]
        %v1944 = vld [vmem:[%s802 + $0x28] sm:$0xff]
        %v1945 = vld [vmem:[%s802 + $0x30] sm:$0xff]
        %v1946 = vld [vmem:[%s802 + $0x38] sm:$0xff]
        %v1947 = vld [vmem:[%s802 + $0x40] sm:$0xff]
        %v1948 = vld [vmem:[%s802 + $0x48] sm:$0xff]
        %v1949 = vld [vmem:[%s802 + $0x50] sm:$0xff]
        %v1950 = vld [vmem:[%s802 + $0x58] sm:$0xff]
        %v1951 = vld [vmem:[%s802 + $0x60] sm:$0xff]
        %v1952 = vld [vmem:[%s802 + $0x68] sm:$0xff]
        %v1953 = vld [vmem:[%s802 + $0x70] sm:$0xff]
        %v1954 = vld [vmem:[%s802 + $0x78] sm:$0xff]
        %v1955 = vld [vmem:[%s806] sm:$0x3]
        %v1957 = vlaneseq
        %v1958 = vshrl.u32 %v1957, 7
        %v1959 = vsub.s32 0, %v1958
        %v1960 = vrot.slane %v1955, %v1959
        %v1961 = vlaneseq
        %v1962 = vshrl.u32 %v1961, 7
        %v1963 = vsub.s32 1, %v1962
        %v1964 = vrot.slane %v1955, %v1963
        %v1983 = vunpack.c.l.b16 %v1939
        %v1984 = vunpack.c.h.b16 %v1939
        %v1985 = vunpack.c.l.b16 %v1940
        %v1986 = vunpack.c.h.b16 %v1940
        %v1987 = vunpack.c.l.b16 %v1941
        %v1988 = vunpack.c.h.b16 %v1941
        %v1989 = vunpack.c.l.b16 %v1942
        %v1990 = vunpack.c.h.b16 %v1942
        %v1991 = vunpack.c.l.b16 %v1943
        %v1992 = vunpack.c.h.b16 %v1943
        %v1993 = vunpack.c.l.b16 %v1944
        %v1994 = vunpack.c.h.b16 %v1944
        %v1995 = vunpack.c.l.b16 %v1945
        %v1996 = vunpack.c.h.b16 %v1945
        %v1997 = vunpack.c.l.b16 %v1946
        %v1998 = vunpack.c.h.b16 %v1946
        %v1999 = vunpack.c.l.b16 %v1947
        %v2000 = vunpack.c.h.b16 %v1947
        %v2001 = vunpack.c.l.b16 %v1948
        %v2002 = vunpack.c.h.b16 %v1948
        %v2003 = vunpack.c.l.b16 %v1949
        %v2004 = vunpack.c.h.b16 %v1949
        %v2005 = vunpack.c.l.b16 %v1950
        %v2006 = vunpack.c.h.b16 %v1950
        %v2007 = vunpack.c.l.b16 %v1951
        %v2008 = vunpack.c.h.b16 %v1951
        %v2009 = vunpack.c.l.b16 %v1952
        %v2010 = vunpack.c.h.b16 %v1952
        %v2011 = vunpack.c.l.b16 %v1953
        %v2012 = vunpack.c.h.b16 %v1953
        %v2013 = vunpack.c.l.b16 %v1954
        %v2014 = vunpack.c.h.b16 %v1954
        %v2015 = vpack.c.b16 %v1985, %v1983
        %v2016 = vpack.c.b16 %v1986, %v1984
        %v2017 = vpack.c.b16 %v1989, %v1987
        %v2018 = vpack.c.b16 %v1990, %v1988
        %v2019 = vpack.c.b16 %v1993, %v1991
        %v2020 = vpack.c.b16 %v1994, %v1992
        %v2021 = vpack.c.b16 %v1997, %v1995
        %v2022 = vpack.c.b16 %v1998, %v1996
        %v2023 = vpack.c.b16 %v2001, %v1999
        %v2024 = vpack.c.b16 %v2002, %v2000
        %v2025 = vpack.c.b16 %v2005, %v2003
        %v2026 = vpack.c.b16 %v2006, %v2004
        %v2027 = vpack.c.b16 %v2009, %v2007
        %v2028 = vpack.c.b16 %v2010, %v2008
        %v2029 = vpack.c.b16 %v2013, %v2011
        %v2030 = vpack.c.b16 %v2014, %v2012
        %2047 = vmatprep.subr.bf16.mxu0 %v2016
        %2048 = vmatpush1.bf16.msra.mxu0 %v2015
        %2049 = vmatprep.subr.bf16.mxu0 %v2018
        %2050 = vmatpush1.bf16.msra.mxu0 %v2017
        %2051 = vmatprep.subr.bf16.mxu0 %v2020
        %2052 = vmatpush1.bf16.msra.mxu0 %v2019
        %2053 = vmatprep.subr.bf16.mxu0 %v2022
        %2054 = vmatpush1.bf16.msra.mxu0 %v2021
        %2055 = vmatprep.subr.bf16.mxu0 %v2024
        %2056 = vmatpush1.bf16.msra.mxu0 %v2023
        %2057 = vmatprep.subr.bf16.mxu0 %v2026
        %2058 = vmatpush1.bf16.msra.mxu0 %v2025
        %2059 = vmatprep.subr.bf16.mxu0 %v2028
        %2060 = vmatpush1.bf16.msra.mxu0 %v2027
        %2061 = vmatprep.subr.bf16.mxu0 %v2030
        %2062 = vmatpush1.bf16.msra.mxu0 %v2029
        %2063 = vmatprep.subr.bf16.mxu0 0
        %2064 = vmatpush1.bf16.msra.mxu0 0
        %2065 = vmatprep.subr.bf16.mxu0 0
        %2066 = vmatpush1.bf16.msra.mxu0 0
        %2067 = vmatprep.subr.bf16.mxu0 0
        %2068 = vmatpush1.bf16.msra.mxu0 0
        %2069 = vmatprep.subr.bf16.mxu0 0
        %2070 = vmatpush1.bf16.msra.mxu0 0
        %2071 = vmatprep.subr.bf16.mxu0 0
        %2072 = vmatpush1.bf16.msra.mxu0 0
        %2073 = vmatprep.subr.bf16.mxu0 0
        %2074 = vmatpush1.bf16.msra.mxu0 0
        %2075 = vmatprep.subr.bf16.mxu0 0
        %2076 = vmatpush1.bf16.msra.mxu0 0
        %2077 = vmatprep.subr.bf16.mxu0 0
        %2078 = vmatpush1.bf16.msra.mxu0 0
        %2079 = vmatprep.mubr.bf16.mxu0 0
        %2080 = vmatmul.mubr.bf16.gmra.mrb[0].mxu0 %v1937
        %v2081 = vpop.f32.mrb[0].mxu0
        %v2082 = vadd.f32 %v1960, %v2081
        %v2083 = vpop.f32.mrb[0].mxu0
        %v2084 = vadd.f32 %v1964, %v2083
        %v2085 = vpop.f32.mrb[0].mxu0
        %v2086 = vadd.f32 %v1960, %v2085
        %v2087 = vpop.f32.mrb[0].mxu0
        %v2088 = vadd.f32 %v1964, %v2087
        %2089 = vmatprep.mubr.bf16.mxu0 0
        %2090 = vmatmul.mubr.bf16.gmra.mrb[0].mxu0 %v1938
        %v2091 = vpop.f32.mrb[0].mxu0
        %v2092 = vadd.f32 %v1960, %v2091
        %v2093 = vpop.f32.mrb[0].mxu0
        %v2094 = vadd.f32 %v1964, %v2093
        %v2095 = vpop.f32.mrb[0].mxu0
        %v2096 = vadd.f32 %v1960, %v2095
        %v2097 = vpop.f32.mrb[0].mxu0
        %v2098 = vadd.f32 %v1964, %v2097
        %2099 = vdwg.mxu0
        %v2100 = vmul.f32 %v2082, %v2082
        %v2101 = vmul.f32 %v2084, %v2084
        %v2102 = vmul.f32 %v2086, %v2086
        %v2103 = vmul.f32 %v2088, %v2088
        %v2104 = vmul.f32 %v2092, %v2092
        %v2105 = vmul.f32 %v2094, %v2094
        %v2106 = vmul.f32 %v2096, %v2096
        %v2107 = vmul.f32 %v2098, %v2098
        %v2108 = vmul.f32 %v2082, %v2100
        %v2109 = vmul.f32 %v2084, %v2101
        %v2110 = vmul.f32 %v2086, %v2102
        %v2111 = vmul.f32 %v2088, %v2103
        %v2112 = vmul.f32 %v2092, %v2104
        %v2113 = vmul.f32 %v2094, %v2105
        %v2114 = vmul.f32 %v2096, %v2106
        %v2115 = vmul.f32 %v2098, %v2107
        %v2116 = vmul.f32 %v2108, 0.044715
        %v2117 = vmul.f32 %v2109, 0.044715
        %v2118 = vmul.f32 %v2110, 0.044715
        %v2119 = vmul.f32 %v2111, 0.044715
        %v2120 = vmul.f32 %v2112, 0.044715
        %v2121 = vmul.f32 %v2113, 0.044715
        %v2122 = vmul.f32 %v2114, 0.044715
        %v2123 = vmul.f32 %v2115, 0.044715
        %v2124 = vadd.f32 %v2082, %v2116
        %v2125 = vadd.f32 %v2084, %v2117
        %v2126 = vadd.f32 %v2086, %v2118
        %v2127 = vadd.f32 %v2088, %v2119
        %v2128 = vadd.f32 %v2092, %v2120
        %v2129 = vadd.f32 %v2094, %v2121
        %v2130 = vadd.f32 %v2096, %v2122
        %v2131 = vadd.f32 %v2098, %v2123
        %v2132 = vmul.f32 %v2124, 0.7978846
        %v2133 = vmul.f32 %v2125, 0.7978846
        %v2134 = vmul.f32 %v2126, 0.7978846
        %v2135 = vmul.f32 %v2127, 0.7978846
        %v2136 = vmul.f32 %v2128, 0.7978846
        %v2137 = vmul.f32 %v2129, 0.7978846
        %v2138 = vmul.f32 %v2130, 0.7978846
        %v2139 = vmul.f32 %v2131, 0.7978846
        %v2140 = vtanh.pop %v2132
        %v2141 = vtanh.pop %v2133
        %v2142 = vtanh.pop %v2134
        %v2143 = vtanh.pop %v2135
        %v2144 = vtanh.pop %v2136
        %v2145 = vtanh.pop %v2137
        %v2146 = vtanh.pop %v2138
        %v2147 = vtanh.pop %v2139
        %v2148 = vadd.f32 %v2140, 1.0
        %v2149 = vadd.f32 %v2141, 1.0
        %v2150 = vadd.f32 %v2142, 1.0
        %v2151 = vadd.f32 %v2143, 1.0
        %v2152 = vadd.f32 %v2144, 1.0
        %v2153 = vadd.f32 %v2145, 1.0
        %v2154 = vadd.f32 %v2146, 1.0
        %v2155 = vadd.f32 %v2147, 1.0
        %v2156 = vmul.f32 %v2148, 0.5
        %v2157 = vmul.f32 %v2149, 0.5
        %v2158 = vmul.f32 %v2150, 0.5
        %v2159 = vmul.f32 %v2151, 0.5
        %v2160 = vmul.f32 %v2152, 0.5
        %v2161 = vmul.f32 %v2153, 0.5
        %v2162 = vmul.f32 %v2154, 0.5
        %v2163 = vmul.f32 %v2155, 0.5
        %v2164 = vmul.f32 %v2082, %v2156
        %v2165 = vmul.f32 %v2084, %v2157
        %v2166 = vmul.f32 %v2086, %v2158
        %v2167 = vmul.f32 %v2088, %v2159
        %v2168 = vmul.f32 %v2092, %v2160
        %v2169 = vmul.f32 %v2094, %v2161
        %v2170 = vmul.f32 %v2096, %v2162
        %v2171 = vmul.f32 %v2098, %v2163
        %v2172 = vpack.c.bf16 %v2166, %v2164
        %v2173 = vpack.c.bf16 %v2167, %v2165
        %v2174 = vpack.c.bf16 %v2170, %v2168
        %v2175 = vpack.c.bf16 %v2171, %v2169
        %v2176 = vld [vmem:[%s811] sm:$0xf]
        %v2177 = vld [vmem:[%s811 + $0x4] sm:$0xf]
        %v2178 = vld [vmem:[%s811 + $0x8] sm:$0xf]
        %v2179 = vld [vmem:[%s811 + $0xc] sm:$0xf]
        %v2180 = vld [vmem:[%s811 + $0x10] sm:$0xf]
        %v2181 = vld [vmem:[%s811 + $0x14] sm:$0xf]
        %v2182 = vld [vmem:[%s811 + $0x18] sm:$0xf]
        %v2183 = vld [vmem:[%s811 + $0x1c] sm:$0xf]
        %v2184 = vld [vmem:[%s811 + $0x20] sm:$0xf]
        %v2185 = vld [vmem:[%s811 + $0x24] sm:$0xf]
        %v2186 = vld [vmem:[%s811 + $0x28] sm:$0xf]
        %v2187 = vld [vmem:[%s811 + $0x2c] sm:$0xf]
        %v2188 = vld [vmem:[%s811 + $0x30] sm:$0xf]
        %v2189 = vld [vmem:[%s811 + $0x34] sm:$0xf]
        %v2190 = vld [vmem:[%s811 + $0x38] sm:$0xf]
        %v2191 = vld [vmem:[%s811 + $0x3c] sm:$0xf]
        %v2192 = vld [vmem:[%s811 + $0x40] sm:$0xf]
        %v2193 = vld [vmem:[%s811 + $0x44] sm:$0xf]
        %v2194 = vld [vmem:[%s811 + $0x48] sm:$0xf]
        %v2195 = vld [vmem:[%s811 + $0x4c] sm:$0xf]
        %v2196 = vld [vmem:[%s811 + $0x50] sm:$0xf]
        %v2197 = vld [vmem:[%s811 + $0x54] sm:$0xf]
        %v2198 = vld [vmem:[%s811 + $0x58] sm:$0xf]
        %v2199 = vld [vmem:[%s811 + $0x5c] sm:$0xf]
        %v2200 = vld [vmem:[%s811 + $0x60] sm:$0xf]
        %v2201 = vld [vmem:[%s811 + $0x64] sm:$0xf]
        %v2202 = vld [vmem:[%s811 + $0x68] sm:$0xf]
        %v2203 = vld [vmem:[%s811 + $0x6c] sm:$0xf]
        %v2204 = vld [vmem:[%s811 + $0x70] sm:$0xf]
        %v2205 = vld [vmem:[%s811 + $0x74] sm:$0xf]
        %v2206 = vld [vmem:[%s811 + $0x78] sm:$0xf]
        %v2207 = vld [vmem:[%s811 + $0x7c] sm:$0xf]
        %v2208 = vld [vmem:[%s814] sm:$0x1]
        %v2210 = vlaneseq
        %v2211 = vshrl.u32 %v2210, 7
        %v2212 = vsub.s32 0, %v2211
        %v2213 = vrot.slane %v2208, %v2212
        %v2247 = vunpack.c.l.b16 %v2176
        %v2248 = vunpack.c.l.b16 %v2177
        %v2249 = vunpack.c.l.b16 %v2178
        %v2250 = vunpack.c.l.b16 %v2179
        %v2251 = vunpack.c.l.b16 %v2180
        %v2252 = vunpack.c.l.b16 %v2181
        %v2253 = vunpack.c.l.b16 %v2182
        %v2254 = vunpack.c.l.b16 %v2183
        %v2255 = vunpack.c.l.b16 %v2184
        %v2256 = vunpack.c.l.b16 %v2185
        %v2257 = vunpack.c.l.b16 %v2186
        %v2258 = vunpack.c.l.b16 %v2187
        %v2259 = vunpack.c.l.b16 %v2188
        %v2260 = vunpack.c.l.b16 %v2189
        %v2261 = vunpack.c.l.b16 %v2190
        %v2262 = vunpack.c.l.b16 %v2191
        %v2263 = vunpack.c.l.b16 %v2192
        %v2264 = vunpack.c.l.b16 %v2193
        %v2265 = vunpack.c.l.b16 %v2194
        %v2266 = vunpack.c.l.b16 %v2195
        %v2267 = vunpack.c.l.b16 %v2196
        %v2268 = vunpack.c.l.b16 %v2197
        %v2269 = vunpack.c.l.b16 %v2198
        %v2270 = vunpack.c.l.b16 %v2199
        %v2271 = vunpack.c.l.b16 %v2200
        %v2272 = vunpack.c.l.b16 %v2201
        %v2273 = vunpack.c.l.b16 %v2202
        %v2274 = vunpack.c.l.b16 %v2203
        %v2275 = vunpack.c.l.b16 %v2204
        %v2276 = vunpack.c.l.b16 %v2205
        %v2277 = vunpack.c.l.b16 %v2206
        %v2278 = vunpack.c.l.b16 %v2207
        %v2279 = vpack.c.b16 %v2248, %v2247
        %v2280 = vpack.c.b16 %v2250, %v2249
        %v2281 = vpack.c.b16 %v2252, %v2251
        %v2282 = vpack.c.b16 %v2254, %v2253
        %v2283 = vpack.c.b16 %v2256, %v2255
        %v2284 = vpack.c.b16 %v2258, %v2257
        %v2285 = vpack.c.b16 %v2260, %v2259
        %v2286 = vpack.c.b16 %v2262, %v2261
        %v2287 = vpack.c.b16 %v2264, %v2263
        %v2288 = vpack.c.b16 %v2266, %v2265
        %v2289 = vpack.c.b16 %v2268, %v2267
        %v2290 = vpack.c.b16 %v2270, %v2269
        %v2291 = vpack.c.b16 %v2272, %v2271
        %v2292 = vpack.c.b16 %v2274, %v2273
        %v2293 = vpack.c.b16 %v2276, %v2275
        %v2294 = vpack.c.b16 %v2278, %v2277
        %2311 = vmatprep.subr.bf16.mxu0 0
        %2312 = vmatpush1.bf16.msra.mxu0 %v2279
        %2313 = vmatprep.subr.bf16.mxu0 0
        %2314 = vmatpush1.bf16.msra.mxu0 %v2280
        %2315 = vmatprep.subr.bf16.mxu0 0
        %2316 = vmatpush1.bf16.msra.mxu0 %v2281
        %2317 = vmatprep.subr.bf16.mxu0 0
        %2318 = vmatpush1.bf16.msra.mxu0 %v2282
        %2319 = vmatprep.subr.bf16.mxu0 0
        %2320 = vmatpush1.bf16.msra.mxu0 %v2283
        %2321 = vmatprep.subr.bf16.mxu0 0
        %2322 = vmatpush1.bf16.msra.mxu0 %v2284
        %2323 = vmatprep.subr.bf16.mxu0 0
        %2324 = vmatpush1.bf16.msra.mxu0 %v2285
        %2325 = vmatprep.subr.bf16.mxu0 0
        %2326 = vmatpush1.bf16.msra.mxu0 %v2286
        %2327 = vmatprep.subr.bf16.mxu0 0
        %2328 = vmatpush1.bf16.msra.mxu0 %v2287
        %2329 = vmatprep.subr.bf16.mxu0 0
        %2330 = vmatpush1.bf16.msra.mxu0 %v2288
        %2331 = vmatprep.subr.bf16.mxu0 0
        %2332 = vmatpush1.bf16.msra.mxu0 %v2289
        %2333 = vmatprep.subr.bf16.mxu0 0
        %2334 = vmatpush1.bf16.msra.mxu0 %v2290
        %2335 = vmatprep.subr.bf16.mxu0 0
        %2336 = vmatpush1.bf16.msra.mxu0 %v2291
        %2337 = vmatprep.subr.bf16.mxu0 0
        %2338 = vmatpush1.bf16.msra.mxu0 %v2292
        %2339 = vmatprep.subr.bf16.mxu0 0
        %2340 = vmatpush1.bf16.msra.mxu0 %v2293
        %2341 = vmatprep.subr.bf16.mxu0 0
        %2342 = vmatpush1.bf16.msra.mxu0 %v2294
        %2343 = vmatprep.mubr.bf16.mxu0 %v2173
        %2344 = vmatmul.mubr.bf16.gmra.mrb[0].mxu0 %v2172
        %v2345 = vpop.f32.mrb[0].mxu0
        %v2346 = vadd.f32 %v2213, %v2345
        %v2347 = vpop.f32.mrb[0].mxu0
        %v2348 = vpop.f32.mrb[0].mxu0
        %v2349 = vadd.f32 %v2213, %v2348
        %v2350 = vpop.f32.mrb[0].mxu0
        %2351 = vmatprep.mubr.bf16.mxu0 %v2175
        %2352 = vmatmul.mubr.bf16.gmra.mrb[0].mxu0 %v2174
        %v2353 = vpop.f32.mrb[0].mxu0
        %v2354 = vadd.f32 %v2213, %v2353
        %v2355 = vpop.f32.mrb[0].mxu0
        %v2356 = vpop.f32.mrb[0].mxu0
        %v2357 = vadd.f32 %v2213, %v2356
        %v2358 = vpop.f32.mrb[0].mxu0
        %2359 = vdwg.mxu0
        %v2360 = vadd.f32 %v1933, %v2346
        %v2361 = vadd.f32 %v1934, %v2349
        %v2362 = vadd.f32 %v1935, %v2354
        %v2363 = vadd.f32 %v1936, %v2357
        %v2364 = vld [vmem:[%s817] sm:$0x1]
        %v2365 = vld [vmem:[%s820] sm:$0x1]
        %2366 = vadd.xlane.f32.xlu0 %v2360
        %v2367 = vpop.xlane.xlu0 %2366
        %2368 = vadd.xlane.f32.xlu0 %v2361
        %v2369 = vpop.xlane.xlu0 %2368
        %2370 = vadd.xlane.f32.xlu0 %v2362
        %v2371 = vpop.xlane.xlu0 %2370
        %2372 = vadd.xlane.f32.xlu0 %v2363
        %v2373 = vpop.xlane.xlu0 %2372
        %v2374 = vmul.f32 %v2367, %v1880
        %v2375 = vmul.f32 %v2369, %v1880
        %v2376 = vmul.f32 %v2371, %v1880
        %v2377 = vmul.f32 %v2373, %v1880
        %v2378 = vsub.f32 %v2360, %v2374
        %v2379 = vsub.f32 %v2361, %v2375
        %v2380 = vsub.f32 %v2362, %v2376
        %v2381 = vsub.f32 %v2363, %v2377
        %v2382 = vmul.f32 %v2378, %v2378
        %v2383 = vmul.f32 %v2379, %v2379
        %v2384 = vmul.f32 %v2380, %v2380
        %v2385 = vmul.f32 %v2381, %v2381
        %2386 = vadd.xlane.f32.xlu0 %v2382
        %v2387 = vpop.xlane.xlu0 %2386
        %2388 = vadd.xlane.f32.xlu0 %v2383
        %v2389 = vpop.xlane.xlu0 %2388
        %2390 = vadd.xlane.f32.xlu0 %v2384
        %v2391 = vpop.xlane.xlu0 %2390
        %2392 = vadd.xlane.f32.xlu0 %v2385
        %v2393 = vpop.xlane.xlu0 %2392
        %v2394 = vmul.f32 %v2387, %v1880
        %v2395 = vmul.f32 %v2389, %v1880
        %v2396 = vmul.f32 %v2391, %v1880
        %v2397 = vmul.f32 %v2393, %v1880
        %v2398 = vadd.f32 %v2394, 1e-12
        %v2399 = vadd.f32 %v2395, 1e-12
        %v2400 = vadd.f32 %v2396, 1e-12
        %v2401 = vadd.f32 %v2397, 1e-12
        %v2402 = vrsqrt.pop %v2398
        %v2403 = vrsqrt.pop %v2399
        %v2404 = vrsqrt.pop %v2400
        %v2405 = vrsqrt.pop %v2401
        %v2406 = vmul.f32 %v2378, %v2402
        %v2407 = vmul.f32 %v2379, %v2403
        %v2408 = vmul.f32 %v2380, %v2404
        %v2409 = vmul.f32 %v2381, %v2405
        %v2411 = vlaneseq
        %v2412 = vshrl.u32 %v2411, 7
        %v2413 = vsub.s32 0, %v2412
        %v2414 = vrot.slane %v2364, %v2413
        %v2416 = vmul.f32 %v2406, %v2414
        %v2417 = vmul.f32 %v2407, %v2414
        %v2418 = vmul.f32 %v2408, %v2414
        %v2419 = vmul.f32 %v2409, %v2414
        %v2421 = vlaneseq
        %v2422 = vshrl.u32 %v2421, 7
        %v2423 = vsub.s32 0, %v2422
        %v2424 = vrot.slane %v2365, %v2423
        %v2426 = vadd.f32 %v2416, %v2424
        %v2427 = vadd.f32 %v2417, %v2424
        %v2428 = vadd.f32 %v2418, %v2424
        %v2429 = vadd.f32 %v2419, %v2424
        %2430 = vst [vmem:[#allocation2] sm:$0xff] %v2426
        %2431 = vst [vmem:[#allocation2 + $0x8] sm:$0xff] %v2427
        %2432 = vst [vmem:[#allocation2 + $0x10] sm:$0xff] %v2428
        %2433 = vst [vmem:[#allocation2 + $0x18] sm:$0xff] %v2429
        %p2434 = scmp.eq.s32.totalorder %s33, 1
        // Predicated region
        $region109: #{encoder_text_forward.1} parent=103 // pred_check
          %p2435 = pneg %p2434
        $region110: #{encoder_text_forward.1} parent=103 // pred_check_branch
          %2437 = sbr.rel (%p2435) target = $region112
        $region111: #{encoder_text_forward.1} parent=103 // pred_region
          %v2438 = vpack.c.bf16 %v2427, %v2426
          %v2439 = vpack.c.bf16 %v2429, %v2428
          %v2440 = vld [vmem:[%s19] sm:$0xf]
          %v2441 = vld [vmem:[%s19 + $0x4] sm:$0xf]
          %v2442 = vld [vmem:[%s19 + $0x8] sm:$0xf]
          %v2443 = vld [vmem:[%s19 + $0xc] sm:$0xf]
          %v2444 = vld [vmem:[%s19 + $0x10] sm:$0xf]
          %v2445 = vld [vmem:[%s19 + $0x14] sm:$0xf]
          %v2446 = vld [vmem:[%s19 + $0x18] sm:$0xf]
          %v2447 = vld [vmem:[%s19 + $0x1c] sm:$0xf]
          %v2448 = vld [vmem:[%s19 + $0x20] sm:$0xf]
          %v2449 = vld [vmem:[%s19 + $0x24] sm:$0xf]
          %v2450 = vld [vmem:[%s19 + $0x28] sm:$0xf]
          %v2451 = vld [vmem:[%s19 + $0x2c] sm:$0xf]
          %v2452 = vld [vmem:[%s19 + $0x30] sm:$0xf]
          %v2453 = vld [vmem:[%s19 + $0x34] sm:$0xf]
          %v2454 = vld [vmem:[%s19 + $0x38] sm:$0xf]
          %v2455 = vld [vmem:[%s19 + $0x3c] sm:$0xf]
          %v2456 = vld [vmem:[%s20] sm:$0x1]
          %v2458 = vlaneseq
          %v2459 = vshrl.u32 %v2458, 7
          %v2460 = vsub.s32 0, %v2459
          %v2461 = vrot.slane %v2456, %v2460
          %v2479 = vunpack.c.l.b16 %v2440
          %v2480 = vunpack.c.l.b16 %v2441
          %v2481 = vunpack.c.l.b16 %v2442
          %v2482 = vunpack.c.l.b16 %v2443
          %v2483 = vunpack.c.l.b16 %v2444
          %v2484 = vunpack.c.l.b16 %v2445
          %v2485 = vunpack.c.l.b16 %v2446
          %v2486 = vunpack.c.l.b16 %v2447
          %v2487 = vunpack.c.l.b16 %v2448
          %v2488 = vunpack.c.l.b16 %v2449
          %v2489 = vunpack.c.l.b16 %v2450
          %v2490 = vunpack.c.l.b16 %v2451
          %v2491 = vunpack.c.l.b16 %v2452
          %v2492 = vunpack.c.l.b16 %v2453
          %v2493 = vunpack.c.l.b16 %v2454
          %v2494 = vunpack.c.l.b16 %v2455
          %v2495 = vpack.c.b16 %v2480, %v2479
          %v2496 = vpack.c.b16 %v2482, %v2481
          %v2497 = vpack.c.b16 %v2484, %v2483
          %v2498 = vpack.c.b16 %v2486, %v2485
          %v2499 = vpack.c.b16 %v2488, %v2487
          %v2500 = vpack.c.b16 %v2490, %v2489
          %v2501 = vpack.c.b16 %v2492, %v2491
          %v2502 = vpack.c.b16 %v2494, %v2493
          %2511 = vmatprep.subr.bf16.mxu0 0
          %2512 = vmatpush1.bf16.msra.mxu0 %v2495
          %2513 = vmatprep.subr.bf16.mxu0 0
          %2514 = vmatpush1.bf16.msra.mxu0 %v2496
          %2515 = vmatprep.subr.bf16.mxu0 0
          %2516 = vmatpush1.bf16.msra.mxu0 %v2497
          %2517 = vmatprep.subr.bf16.mxu0 0
          %2518 = vmatpush1.bf16.msra.mxu0 %v2498
          %2519 = vmatprep.subr.bf16.mxu0 0
          %2520 = vmatpush1.bf16.msra.mxu0 %v2499
          %2521 = vmatprep.subr.bf16.mxu0 0
          %2522 = vmatpush1.bf16.msra.mxu0 %v2500
          %2523 = vmatprep.subr.bf16.mxu0 0
          %2524 = vmatpush1.bf16.msra.mxu0 %v2501
          %2525 = vmatprep.subr.bf16.mxu0 0
          %2526 = vmatpush1.bf16.msra.mxu0 %v2502
          %2527 = vmatprep.subr.bf16.mxu0 0
          %2528 = vmatpush1.bf16.msra.mxu0 0
          %2529 = vmatprep.subr.bf16.mxu0 0
          %2530 = vmatpush1.bf16.msra.mxu0 0
          %2531 = vmatprep.subr.bf16.mxu0 0
          %2532 = vmatpush1.bf16.msra.mxu0 0
          %2533 = vmatprep.subr.bf16.mxu0 0
          %2534 = vmatpush1.bf16.msra.mxu0 0
          %2535 = vmatprep.subr.bf16.mxu0 0
          %2536 = vmatpush1.bf16.msra.mxu0 0
          %2537 = vmatprep.subr.bf16.mxu0 0
          %2538 = vmatpush1.bf16.msra.mxu0 0
          %2539 = vmatprep.subr.bf16.mxu0 0
          %2540 = vmatpush1.bf16.msra.mxu0 0
          %2541 = vmatprep.subr.bf16.mxu0 0
          %2542 = vmatpush1.bf16.msra.mxu0 0
          %2543 = vmatprep.mubr.bf16.mxu0 0
          %2544 = vmatmul.mubr.bf16.gmra.mrb[0].mxu0 %v2438
          %v2545 = vpop.f32.mrb[0].mxu0
          %v2546 = vadd.f32 %v2461, %v2545
          %v2547 = vpop.f32.mrb[0].mxu0
          %v2548 = vpop.f32.mrb[0].mxu0
          %v2549 = vadd.f32 %v2461, %v2548
          %v2550 = vpop.f32.mrb[0].mxu0
          %2551 = vmatprep.mubr.bf16.mxu0 0
          %2552 = vmatmul.mubr.bf16.gmra.mrb[0].mxu0 %v2439
          %v2553 = vpop.f32.mrb[0].mxu0
          %v2554 = vadd.f32 %v2461, %v2553
          %v2555 = vpop.f32.mrb[0].mxu0
          %v2556 = vpop.f32.mrb[0].mxu0
          %v2557 = vadd.f32 %v2461, %v2556
          %v2558 = vpop.f32.mrb[0].mxu0
          %2559 = vdwg.mxu0
          %2560 = vst [vmem:[#allocation3] sm:$0xff] %v2546
          %2561 = vst [vmem:[#allocation3 + $0x8] sm:$0xff] %v2549
          %2562 = vst [vmem:[#allocation3 + $0x10] sm:$0xff] %v2554
          %2563 = vst [vmem:[#allocation3 + $0x18] sm:$0xff] %v2557
        $region112: #{encoder_text_forward.1} parent=103 // pred_fallthru
          _
        // Predicated region
        $region113: #{encoder_text_forward.1} parent=103 // pred_check
          %p2564 = pneg %p547
        $region114: #{encoder_text_forward.1} parent=103 // pred_check_branch
          %2566 = sbr.rel (%p2564) target = $region116
        $region115: #{encoder_text_forward.1} parent=103 // pred_region
          %s2568 = ssub.s32 512, 512
          %2569 = vsyncadd [#allocation4], %s2568
          %s2570 = sshll.u32 [#allocation3], 4
          %s2571 = int_to_ptr.vmem [resolvable:$true] %s2570
          %2576 = dma.vmem_to_hbm [thread:$0]  %s2571, 512, %s21, [#allocation4], 128, 128, 8
        $region116: #{encoder_text_forward.1} parent=103 // pred_fallthru
          _
        // Predicated region
        $region117: #{encoder_text_forward.1} parent=103 // pred_check
          %p2577 = pneg %p547
        $region118: #{encoder_text_forward.1} parent=103 // pred_check_branch
          %2579 = sbr.rel (%p2577) target = $region120
        $region119: #{encoder_text_forward.1} parent=103 // pred_region
          %2580 = dma.done [#allocation4], 512
        $region120: #{encoder_text_forward.1} parent=103 // pred_fallthru
          _
      $region104: #{encoder_text_forward.1} parent=5 // pred_fallthru
        _
      %p2581 = scmp.le.s32.totalorder 2, %s28
      // Predicated region
      $region121: #{encoder_text_forward.1} parent=5 // pred_check
        %p2582 = pneg %p2581
      $region122: #{encoder_text_forward.1} parent=5 // pred_check_branch
        %2584 = sbr.rel (%p2582) target = $region124
      $region123: #{encoder_text_forward.1} parent=5 // pred_region
        %s2585 = ssub.s32 %s28, 2
      $region124: #{encoder_text_forward.1} parent=5 // pred_fallthru
        _
    $region6: #{encoder_text_forward.1} parent=1 // loop_footer
      %s32 = sadd.s32 1, %s28
    $region7: #{encoder_text_forward.1} parent=1 // loop_footer_branch
      %27 = sbr.rel target = $region3
    $region8: #{encoder_text_forward.1} parent=1 // loop_exit
      _
    %2586 = vsyncpa [#allocation4], 1
    %s2587 = scalar_lea.sflag [#allocation4], 1
    %2588 = vsyncpa %s2587, 1

</llo_original>
